<compile_context>
chip_gen: v7x
topology: tpu7x:2x2x1
jax: 0.10.0
libtpu: 0.0.40
codegen_flags: <defaults>
</compile_context>

<pallas_src>
import jax
import jax.numpy as jnp
from jax.experimental import pallas as pl
from jax.experimental.pallas import tpu as pltpu

KSIZE = 3
EPS = 1e-5
ROWPAD = 8                  # zero rows above/below each image (1 needed; 8 keeps the
                            # row-halo concat tile-aligned so only the +-1 slices relayout)
CONV_DTYPE = jnp.bfloat16   # MXU operand dtype for the convs (f32 accumulation)


def _banded_weights(w_oihw, width):
    """Fold the kx taps of a 3x3 'same' conv into 3 banded (W*Cin, W*Cout) matrices.

    conv(v)[h] = sum_ky  v[h + ky - 1, :] @ band[ky]          (zero row when out of range)
    band[ky][wi*Cin + ci, wo*Cout + co] = w[co, ci, ky, kx]  with kx = wi - wo + 1 (else 0),
    which also implements the zero padding on the width edges (no lane halo needed).
    """
    c_out, c_in = w_oihw.shape[0], w_oihw.shape[1]
    wi = jnp.arange(width)[:, None]
    wo = jnp.arange(width)[None, :]
    bands = []
    for ky in range(KSIZE):
        acc = jnp.zeros((width * c_in, width * c_out), jnp.float32)
        for kx in range(KSIZE):
            shift = (wi == wo + (kx - 1)).astype(jnp.float32)           # (W, W) band
            tap = w_oihw[:, :, ky, kx].T.astype(jnp.float32)            # (Cin, Cout)
            acc = acc + jnp.kron(shift, tap)
        bands.append(acc)
    return jnp.stack(bands, axis=0).astype(CONV_DTYPE)                  # (3, W*Cin, W*Cout)


def resnet_layer_forward(z_nchw, x_nchw, params, num_groups, images_per_step=None):
    w1, w2, g1, b1, g2, b2, g3, b3 = params
    N, C, H, W = z_nchw.shape
    C_inner = w1.shape[0]
    G = num_groups
    assert C % G == 0 and C_inner % G == 0
    WC, WCi = W * C, W * C_inner
    n_in = H * W * (C_inner // G)       # elements per (image, group) for norm1
    n_ch = H * W * (C // G)             # elements per (image, group) for norm2 / norm3

    # ---- batch packing: Nb images per grid step (M = Nb*H matmul rows), keeping
    # >= 2 grid steps when N allows so both v7x TensorCores get work.
    if images_per_step is None:
        divs = [d for d in range(1, N + 1) if N % d == 0 and d * H <= 128] or [1]
        multi = [d for d in divs if N // d >= 2]
        Nb = max(multi) if multi else max(divs)
    else:
        Nb = images_per_step
    assert N % Nb == 0
    M = Nb * H

    # ---------------- plain-JAX glue: layout + weight repack ----------------
    # NCHW -> (N, H, W*C): lane index = w*C + c (lane-dense fused channels-last).
    to_fused = lambda v: jnp.transpose(v, (0, 2, 3, 1)).reshape(N, H, -1).astype(jnp.float32)
    z2, x2 = to_fused(z_nchw), to_fused(x_nchw)

    w1_b = _banded_weights(w1, W)       # (3, W*C,  W*Ci) bf16
    w2_b = _banded_weights(w2, W)       # (3, W*Ci, W*C)  bf16

    def group_consts(c, gamma, beta):
        cg = c // G
        onehot = (jnp.arange(c)[:, None] // cg == jnp.arange(G)[None, :]).astype(jnp.float32)
        m = jnp.tile(onehot, (W, 1))                                     # (W*c, G)
        gamma_lane = jnp.tile(gamma.astype(jnp.float32), W)              # (W*c,)
        mtg = m.T * gamma_lane[None, :]                                  # (G, W*c) gamma folded
        beta_lane = jnp.tile(beta.astype(jnp.float32), W)[None, :]       # (1, W*c)
        return m, mtg, beta_lane

    m_in, mtg1, b1f = group_consts(C_inner, g1, b1)
    m_ch, mtg2, b2f = group_consts(C, g2, b2)
    _,    mtg3, b3f = group_consts(C, g3, b3)

    # ---------------- kernel helpers (Nb images per grid step) ----------------
    def conv3x3(v, w_ref):
        # v: (M, W*Cin) f32;  w_ref: (3, W*Cin, W*Cout) bf16 banded weights.
        wcin = v.shape[1]
        v3 = v.reshape(Nb, H, wcin)
        zr = jnp.zeros((Nb, ROWPAD, wcin), v.dtype)
        p = jnp.concatenate([zr, v3, zr], axis=1)        # tile-aligned row halo per image

        def op(ky):                                      # rows h + ky - 1 of each image
            sl = p[:, ROWPAD - 1 + ky:ROWPAD - 1 + ky + H, :]
            return sl.reshape(M, wcin).astype(CONV_DTYPE)

        return (jnp.dot(op(0), w_ref[0], preferred_element_type=jnp.float32)
                + jnp.dot(op(1), w_ref[1], preferred_element_type=jnp.float32)
                + jnp.dot(op(2), w_ref[2], preferred_element_type=jnp.float32))

    def group_norm(v, m_ref, mtg_ref, beta_ref, n):
        # v: (M, W*c) f32.  One stats matmul (sum & sum-of-squares fused) and one
        # expansion matmul (scale & shift fused, gamma pre-folded) per norm.
        wcc = v.shape[1]
        stacked = jnp.concatenate([v, v * v], axis=0)                    # (2M, W*c) aligned
        s = jnp.dot(stacked, m_ref[...], preferred_element_type=jnp.float32)   # (2M, G)
        s_img = s.reshape(2 * Nb, H, G).sum(axis=1)                      # per-image sums
        mean = s_img[:Nb] * (1.0 / n)                                    # (Nb, G)
        ex2 = s_img[Nb:] * (1.0 / n)
        inv = jax.lax.rsqrt(jnp.maximum(ex2 - mean * mean, 0.0) + EPS)   # (Nb, G)
        coefs = jnp.concatenate([inv, mean * inv], axis=0)               # (2Nb, G)
        lanes = jnp.dot(coefs, mtg_ref[...], preferred_element_type=jnp.float32)  # (2Nb, W*c)
        scale = lanes[:Nb]                                               # gamma * inv  (per lane)
        shift = beta_ref[...] - lanes[Nb:]                               # beta - gamma*inv*mean
        out3 = v.reshape(Nb, H, wcc) * scale[:, None, :] + shift[:, None, :]
        return out3.reshape(M, wcc)

    def kernel(z_ref, x_ref, w1_ref, w2_ref,
               m_in_ref, mtg1_ref, b1_ref,
               m_ch_ref, mtg2_ref, b2_ref, mtg3_ref, b3_ref,
               out_ref):
        z = z_ref[...].reshape(M, WC)                    # (M, W*C) f32
        x = x_ref[...].reshape(M, WC)
        # y = norm1(relu(conv1(z)))
        h1 = jnp.maximum(conv3x3(z, w1_ref), 0.0)                        # (M, W*Ci) f32
        y = group_norm(h1, m_in_ref, mtg1_ref, b1_ref, n_in)
        # out = norm3(relu(z + norm2(x + conv2(y))))
        h2 = conv3x3(y, w2_ref)                                          # (M, W*C) f32
        n2 = group_norm(x + h2, m_ch_ref, mtg2_ref, b2_ref, n_ch)
        r = jnp.maximum(z + n2, 0.0)
        out_ref[...] = group_norm(r, m_ch_ref, mtg3_ref, b3_ref, n_ch).reshape(Nb, H, WC)

    def cspec(shape):
        # Full-array constant block: fetched once, stays VMEM-resident.
        return pl.BlockSpec(shape, lambda n: (0,) * len(shape))

    io_spec = pl.BlockSpec((Nb, H, WC), lambda n: (n, 0, 0))   # lane-dense (W*C) stores

    out2 = pl.pallas_call(
        kernel,
        out_shape=jax.ShapeDtypeStruct((N, H, WC), jnp.float32),
        grid_spec=pltpu.PrefetchScalarGridSpec(
            num_scalar_prefetch=0,
            grid=(N // Nb,),
            in_specs=[
                io_spec, io_spec,                                  # z, x
                cspec(w1_b.shape), cspec(w2_b.shape),              # banded conv weights
                cspec(m_in.shape), cspec(mtg1.shape), cspec(b1f.shape),
                cspec(m_ch.shape), cspec(mtg2.shape), cspec(b2f.shape),
                cspec(mtg3.shape), cspec(b3f.shape),
            ],
            out_specs=io_spec,
        ),
        compiler_params=pltpu.CompilerParams(
            dimension_semantics=("parallel",),       # no cross-step state at all
            vmem_limit_bytes=32 * 1024 * 1024,
        ),
    )(z2, x2, w1_b, w2_b,
      m_in, mtg1, b1f,
      m_ch, mtg2, b2f, mtg3, b3f)

    # (N, H, W*C) -> NCHW
    return jnp.transpose(out2.reshape(N, H, W, C), (0, 3, 1, 2))


# ---------------- pure-JAX reference (NCHW, mirrors the PyTorch module) ----------------
def ref_forward(z, x, w1, w2, g1, b1, g2, b2, g3, b3, num_groups):
    def gn(v, gamma, beta):
        n, c, _, _ = v.shape
        vg = v.reshape(n, num_groups, -1)
        mean = vg.mean(axis=2, keepdims=True)
        var = jnp.mean((vg - mean) ** 2, axis=2, keepdims=True)
        vn = ((vg - mean) / jnp.sqrt(var + EPS)).reshape(v.shape)
        return vn * gamma.reshape(1, c, 1, 1) + beta.reshape(1, c, 1, 1)

    def conv(v, w):
        return jax.lax.conv_general_dilated(
            v, w, window_strides=(1, 1), padding=((1, 1), (1, 1)),
            dimension_numbers=('NCHW', 'OIHW', 'NCHW'))

    y = gn(jax.nn.relu(conv(z, w1)), g1, b1)
    return gn(jax.nn.relu(z + gn(x + conv(y, w2), g2, b2)), g3, b3)


if __name__ == "__main__":
    # N=4 exercises batch packing (Nb=2 images/step) while keeping 2 parallel grid steps.
    N, C, C_inner, H, W, G = 4, 8, 16, 16, 16, 8   # GroupNorm(8, ...) needs C % 8 == 0

    key = jax.random.PRNGKey(0)
    ks = jax.random.split(key, 10)
    z = jax.random.normal(ks[0], (N, C, H, W), jnp.float32)
    x = jax.random.normal(ks[1], (N, C, H, W), jnp.float32)
    # conv weights ~ N(0, 0.01) as in the module's __init__
    w1 = 0.01 * jax.random.normal(ks[2], (C_inner, C, KSIZE, KSIZE), jnp.float32)
    w2 = 0.01 * jax.random.normal(ks[3], (C, C_inner, KSIZE, KSIZE), jnp.float32)
    # GroupNorm affine params (deterministic, non-trivial scale/shift)
    g1 = 1.0 + 0.1 * jax.random.normal(ks[4], (C_inner,), jnp.float32)
    b1 = 0.1 * jax.random.normal(ks[5], (C_inner,), jnp.float32)
    g2 = 1.0 + 0.1 * jax.random.normal(ks[6], (C,), jnp.float32)
    b2 = 0.1 * jax.random.normal(ks[7], (C,), jnp.float32)
    g3 = 1.0 + 0.1 * jax.random.normal(ks[8], (C,), jnp.float32)
    b3 = 0.1 * jax.random.normal(ks[9], (C,), jnp.float32)

    params = (w1, w2, g1, b1, g2, b2, g3, b3)
    out = resnet_layer_forward(z, x, params, G)
    out = jax.block_until_ready(out)

    ref = ref_forward(z, x, w1, w2, g1, b1, g2, b2, g3, b3, G)
    # bf16 MXU operands (f32 accumulation, f32 GroupNorm/residuals) vs all-f32 reference.
    err = float(jnp.max(jnp.abs(out - ref)))
    assert err < 1e-2, f"max abs error too large: {err}"
    print("KERNEL_OK")
</pallas_src>

<mosaic_0001>
module attributes {stable_mosaic.version = 11 : i64} {
  func.func @kernel(%arg0: i32, %arg1: memref<2x16x128xf32, #tpu.memory_space<vmem>>, %arg2: memref<2x16x128xf32, #tpu.memory_space<vmem>>, %arg3: memref<3x128x256xbf16, #tpu.memory_space<vmem>>, %arg4: memref<3x256x128xbf16, #tpu.memory_space<vmem>>, %arg5: memref<256x8xf32, #tpu.memory_space<vmem>>, %arg6: memref<8x256xf32, #tpu.memory_space<vmem>>, %arg7: memref<1x256xf32, #tpu.memory_space<vmem>>, %arg8: memref<128x8xf32, #tpu.memory_space<vmem>>, %arg9: memref<8x128xf32, #tpu.memory_space<vmem>>, %arg10: memref<1x128xf32, #tpu.memory_space<vmem>>, %arg11: memref<8x128xf32, #tpu.memory_space<vmem>>, %arg12: memref<1x128xf32, #tpu.memory_space<vmem>>, %arg13: memref<2x16x128xf32, #tpu.memory_space<vmem>>) attributes {dimension_semantics = [#tpu.dimension_semantics<parallel>], iteration_bounds = array<i64: 2>, scalar_prefetch = 0 : i64, scratch_operands = 0 : i64, tpu.core_type = #tpu.core_type<tc>, window_params = [{transform_indices = @transform_0, window_bounds = array<i64: 2, 16, 128>}, {transform_indices = @transform_1, window_bounds = array<i64: 2, 16, 128>}, {pipeline_mode = #tpu.pipeline_mode<synchronous>, transform_indices = @transform_2, window_bounds = array<i64: 3, 128, 256>}, {pipeline_mode = #tpu.pipeline_mode<synchronous>, transform_indices = @transform_3, window_bounds = array<i64: 3, 256, 128>}, {pipeline_mode = #tpu.pipeline_mode<synchronous>, transform_indices = @transform_4, window_bounds = array<i64: 256, 8>}, {pipeline_mode = #tpu.pipeline_mode<synchronous>, transform_indices = @transform_5, window_bounds = array<i64: 8, 256>}, {pipeline_mode = #tpu.pipeline_mode<synchronous>, transform_indices = @transform_6, window_bounds = array<i64: 1, 256>}, {pipeline_mode = #tpu.pipeline_mode<synchronous>, transform_indices = @transform_7, window_bounds = array<i64: 128, 8>}, {pipeline_mode = #tpu.pipeline_mode<synchronous>, transform_indices = @transform_8, window_bounds = array<i64: 8, 128>}, {pipeline_mode = #tpu.pipeline_mode<synchronous>, transform_indices = @transform_9, window_bounds = array<i64: 1, 128>}, {pipeline_mode = #tpu.pipeline_mode<synchronous>, transform_indices = @transform_10, window_bounds = array<i64: 8, 128>}, {pipeline_mode = #tpu.pipeline_mode<synchronous>, transform_indices = @transform_11, window_bounds = array<i64: 1, 128>}, {transform_indices = @transform_12, window_bounds = array<i64: 2, 16, 128>}]} {
    %c0 = arith.constant 0 : index
    %c0_0 = arith.constant 0 : index
    %c0_1 = arith.constant 0 : index
    %0 = vector.load %arg1[%c0, %c0_0, %c0_1] : memref<2x16x128xf32, #tpu.memory_space<vmem>>, vector<2x16x128xf32>
    %1 = vector.shape_cast %0 : vector<2x16x128xf32> to vector<32x128xf32>
    %c0_2 = arith.constant 0 : index
    %c0_3 = arith.constant 0 : index
    %c0_4 = arith.constant 0 : index
    %2 = vector.load %arg2[%c0_2, %c0_3, %c0_4] : memref<2x16x128xf32, #tpu.memory_space<vmem>>, vector<2x16x128xf32>
    %3 = vector.shape_cast %2 : vector<2x16x128xf32> to vector<32x128xf32>
    %4 = vector.shape_cast %1 : vector<32x128xf32> to vector<2x16x128xf32>
    %cst = arith.constant 0.000000e+00 : f32
    %5 = vector.broadcast %cst : f32 to vector<2x8x128xf32>
    %6 = tpu.concatenate %5, %4, %5 in 1 : vector<2x8x128xf32>, vector<2x16x128xf32>, vector<2x8x128xf32> -> vector<2x32x128xf32>
    %7 = vector.extract_strided_slice %6 {offsets = [0, 7, 0], sizes = [2, 16, 128], strides = [1, 1, 1]} : vector<2x32x128xf32> to vector<2x16x128xf32>
    %8 = vector.shape_cast %7 : vector<2x16x128xf32> to vector<32x128xf32>
    %9 = arith.truncf %8 : vector<32x128xf32> to vector<32x128xbf16>
    %c0_5 = arith.constant 0 : index
    %c0_6 = arith.constant 0 : index
    %c0_7 = arith.constant 0 : index
    %10 = vector.load %arg3[%c0_5, %c0_6, %c0_7] : memref<3x128x256xbf16, #tpu.memory_space<vmem>>, vector<1x128x256xbf16>
    %11 = vector.shape_cast %10 : vector<1x128x256xbf16> to vector<128x256xbf16>
    %cst_8 = arith.constant dense<0.000000e+00> : vector<32x256xf32>
    %12 = tpu.matmul %9, %11, %cst_8 {dimension_numbers = #tpu.dot_dimension_numbers<[1], [0], [0], [1], [0, 0, 1, 1], [], []>} : vector<32x128xbf16>, vector<128x256xbf16>, vector<32x256xf32> -> vector<32x256xf32>
    %13 = vector.extract_strided_slice %6 {offsets = [0, 8, 0], sizes = [2, 16, 128], strides = [1, 1, 1]} : vector<2x32x128xf32> to vector<2x16x128xf32>
    %14 = vector.shape_cast %13 : vector<2x16x128xf32> to vector<32x128xf32>
    %15 = arith.truncf %14 : vector<32x128xf32> to vector<32x128xbf16>
    %c1 = arith.constant 1 : index
    %c0_9 = arith.constant 0 : index
    %c0_10 = arith.constant 0 : index
    %16 = vector.load %arg3[%c1, %c0_9, %c0_10] : memref<3x128x256xbf16, #tpu.memory_space<vmem>>, vector<1x128x256xbf16>
    %17 = vector.shape_cast %16 : vector<1x128x256xbf16> to vector<128x256xbf16>
    %cst_11 = arith.constant dense<0.000000e+00> : vector<32x256xf32>
    %18 = tpu.matmul %15, %17, %cst_11 {dimension_numbers = #tpu.dot_dimension_numbers<[1], [0], [0], [1], [0, 0, 1, 1], [], []>} : vector<32x128xbf16>, vector<128x256xbf16>, vector<32x256xf32> -> vector<32x256xf32>
    %19 = arith.addf %12, %18 : vector<32x256xf32>
    %20 = vector.extract_strided_slice %6 {offsets = [0, 9, 0], sizes = [2, 16, 128], strides = [1, 1, 1]} : vector<2x32x128xf32> to vector<2x16x128xf32>
    %21 = vector.shape_cast %20 : vector<2x16x128xf32> to vector<32x128xf32>
    %22 = arith.truncf %21 : vector<32x128xf32> to vector<32x128xbf16>
    %c2 = arith.constant 2 : index
    %c0_12 = arith.constant 0 : index
    %c0_13 = arith.constant 0 : index
    %23 = vector.load %arg3[%c2, %c0_12, %c0_13] : memref<3x128x256xbf16, #tpu.memory_space<vmem>>, vector<1x128x256xbf16>
    %24 = vector.shape_cast %23 : vector<1x128x256xbf16> to vector<128x256xbf16>
    %cst_14 = arith.constant dense<0.000000e+00> : vector<32x256xf32>
    %25 = tpu.matmul %22, %24, %cst_14 {dimension_numbers = #tpu.dot_dimension_numbers<[1], [0], [0], [1], [0, 0, 1, 1], [], []>} : vector<32x128xbf16>, vector<128x256xbf16>, vector<32x256xf32> -> vector<32x256xf32>
    %26 = arith.addf %19, %25 : vector<32x256xf32>
    %cst_15 = arith.constant 0.000000e+00 : f32
    %27 = vector.broadcast %cst_15 : f32 to vector<32x256xf32>
    %28 = arith.maximumf %26, %27 : vector<32x256xf32>
    %29 = arith.mulf %28, %28 : vector<32x256xf32>
    %30 = tpu.concatenate %28, %29 in 0 : vector<32x256xf32>, vector<32x256xf32> -> vector<64x256xf32>
    %c0_16 = arith.constant 0 : index
    %c0_17 = arith.constant 0 : index
    %31 = vector.load %arg5[%c0_16, %c0_17] : memref<256x8xf32, #tpu.memory_space<vmem>>, vector<256x8xf32>
    %cst_18 = arith.constant dense<0.000000e+00> : vector<64x8xf32>
    %32 = tpu.matmul %30, %31, %cst_18 {dimension_numbers = #tpu.dot_dimension_numbers<[1], [0], [0], [1], [0, 0, 1, 1], [], []>} : vector<64x256xf32>, vector<256x8xf32>, vector<64x8xf32> -> vector<64x8xf32>
    %33 = vector.shape_cast %32 : vector<64x8xf32> to vector<4x16x8xf32>
    %cst_19 = arith.constant dense<0.000000e+00> : vector<4x8xf32>
    %34 = vector.multi_reduction <add>, %33, %cst_19 [1] : vector<4x16x8xf32> to vector<4x8xf32>
    %35 = vector.extract_strided_slice %34 {offsets = [0, 0], sizes = [2, 8], strides = [1, 1]} : vector<4x8xf32> to vector<2x8xf32>
    %cst_20 = arith.constant 0.001953125 : f32
    %36 = vector.broadcast %cst_20 : f32 to vector<2x8xf32>
    %37 = arith.mulf %35, %36 : vector<2x8xf32>
    %38 = vector.extract_strided_slice %34 {offsets = [2, 0], sizes = [2, 8], strides = [1, 1]} : vector<4x8xf32> to vector<2x8xf32>
    %cst_21 = arith.constant 0.001953125 : f32
    %39 = vector.broadcast %cst_21 : f32 to vector<2x8xf32>
    %40 = arith.mulf %38, %39 : vector<2x8xf32>
    %41 = arith.mulf %37, %37 : vector<2x8xf32>
    %42 = arith.subf %40, %41 : vector<2x8xf32>
    %cst_22 = arith.constant 0.000000e+00 : f32
    %43 = vector.broadcast %cst_22 : f32 to vector<2x8xf32>
    %44 = arith.maximumf %42, %43 : vector<2x8xf32>
    %cst_23 = arith.constant 9.99999974E-6 : f32
    %45 = vector.broadcast %cst_23 : f32 to vector<2x8xf32>
    %46 = arith.addf %44, %45 : vector<2x8xf32>
    %47 = math.rsqrt %46 : vector<2x8xf32>
    %48 = arith.mulf %37, %47 : vector<2x8xf32>
    %49 = tpu.concatenate %47, %48 in 0 : vector<2x8xf32>, vector<2x8xf32> -> vector<4x8xf32>
    %c0_24 = arith.constant 0 : index
    %c0_25 = arith.constant 0 : index
    %50 = vector.load %arg6[%c0_24, %c0_25] : memref<8x256xf32, #tpu.memory_space<vmem>>, vector<8x256xf32>
    %cst_26 = arith.constant dense<0.000000e+00> : vector<4x256xf32>
    %51 = tpu.matmul %49, %50, %cst_26 {dimension_numbers = #tpu.dot_dimension_numbers<[1], [0], [0], [1], [0, 0, 1, 1], [], []>} : vector<4x8xf32>, vector<8x256xf32>, vector<4x256xf32> -> vector<4x256xf32>
    %52 = vector.extract_strided_slice %51 {offsets = [0, 0], sizes = [2, 256], strides = [1, 1]} : vector<4x256xf32> to vector<2x256xf32>
    %c0_27 = arith.constant 0 : index
    %c0_28 = arith.constant 0 : index
    %53 = vector.load %arg7[%c0_27, %c0_28] : memref<1x256xf32, #tpu.memory_space<vmem>>, vector<1x256xf32>
    %54 = vector.extract_strided_slice %51 {offsets = [2, 0], sizes = [2, 256], strides = [1, 1]} : vector<4x256xf32> to vector<2x256xf32>
    %55 = vector.broadcast %53 : vector<1x256xf32> to vector<2x256xf32>
    %56 = arith.subf %55, %54 : vector<2x256xf32>
    %57 = vector.shape_cast %28 : vector<32x256xf32> to vector<2x16x256xf32>
    %58 = vector.shape_cast %52 : vector<2x256xf32> to vector<2x1x256xf32>
    %59 = vector.broadcast %58 : vector<2x1x256xf32> to vector<2x16x256xf32>
    %60 = arith.mulf %57, %59 : vector<2x16x256xf32>
    %61 = vector.shape_cast %56 : vector<2x256xf32> to vector<2x1x256xf32>
    %62 = vector.broadcast %61 : vector<2x1x256xf32> to vector<2x16x256xf32>
    %63 = arith.addf %60, %62 : vector<2x16x256xf32>
    %64 = vector.shape_cast %63 : vector<2x16x256xf32> to vector<32x256xf32>
    %65 = vector.shape_cast %64 : vector<32x256xf32> to vector<2x16x256xf32>
    %cst_29 = arith.constant 0.000000e+00 : f32
    %66 = vector.broadcast %cst_29 : f32 to vector<2x8x256xf32>
    %67 = tpu.concatenate %66, %65, %66 in 1 : vector<2x8x256xf32>, vector<2x16x256xf32>, vector<2x8x256xf32> -> vector<2x32x256xf32>
    %68 = vector.extract_strided_slice %67 {offsets = [0, 7, 0], sizes = [2, 16, 256], strides = [1, 1, 1]} : vector<2x32x256xf32> to vector<2x16x256xf32>
    %69 = vector.shape_cast %68 : vector<2x16x256xf32> to vector<32x256xf32>
    %70 = arith.truncf %69 : vector<32x256xf32> to vector<32x256xbf16>
    %c0_30 = arith.constant 0 : index
    %c0_31 = arith.constant 0 : index
    %c0_32 = arith.constant 0 : index
    %71 = vector.load %arg4[%c0_30, %c0_31, %c0_32] : memref<3x256x128xbf16, #tpu.memory_space<vmem>>, vector<1x256x128xbf16>
    %72 = vector.shape_cast %71 : vector<1x256x128xbf16> to vector<256x128xbf16>
    %cst_33 = arith.constant dense<0.000000e+00> : vector<32x128xf32>
    %73 = tpu.matmul %70, %72, %cst_33 {dimension_numbers = #tpu.dot_dimension_numbers<[1], [0], [0], [1], [0, 0, 1, 1], [], []>} : vector<32x256xbf16>, vector<256x128xbf16>, vector<32x128xf32> -> vector<32x128xf32>
    %74 = vector.extract_strided_slice %67 {offsets = [0, 8, 0], sizes = [2, 16, 256], strides = [1, 1, 1]} : vector<2x32x256xf32> to vector<2x16x256xf32>
    %75 = vector.shape_cast %74 : vector<2x16x256xf32> to vector<32x256xf32>
    %76 = arith.truncf %75 : vector<32x256xf32> to vector<32x256xbf16>
    %c1_34 = arith.constant 1 : index
    %c0_35 = arith.constant 0 : index
    %c0_36 = arith.constant 0 : index
    %77 = vector.load %arg4[%c1_34, %c0_35, %c0_36] : memref<3x256x128xbf16, #tpu.memory_space<vmem>>, vector<1x256x128xbf16>
    %78 = vector.shape_cast %77 : vector<1x256x128xbf16> to vector<256x128xbf16>
    %cst_37 = arith.constant dense<0.000000e+00> : vector<32x128xf32>
    %79 = tpu.matmul %76, %78, %cst_37 {dimension_numbers = #tpu.dot_dimension_numbers<[1], [0], [0], [1], [0, 0, 1, 1], [], []>} : vector<32x256xbf16>, vector<256x128xbf16>, vector<32x128xf32> -> vector<32x128xf32>
    %80 = arith.addf %73, %79 : vector<32x128xf32>
    %81 = vector.extract_strided_slice %67 {offsets = [0, 9, 0], sizes = [2, 16, 256], strides = [1, 1, 1]} : vector<2x32x256xf32> to vector<2x16x256xf32>
    %82 = vector.shape_cast %81 : vector<2x16x256xf32> to vector<32x256xf32>
    %83 = arith.truncf %82 : vector<32x256xf32> to vector<32x256xbf16>
    %c2_38 = arith.constant 2 : index
    %c0_39 = arith.constant 0 : index
    %c0_40 = arith.constant 0 : index
    %84 = vector.load %arg4[%c2_38, %c0_39, %c0_40] : memref<3x256x128xbf16, #tpu.memory_space<vmem>>, vector<1x256x128xbf16>
    %85 = vector.shape_cast %84 : vector<1x256x128xbf16> to vector<256x128xbf16>
    %cst_41 = arith.constant dense<0.000000e+00> : vector<32x128xf32>
    %86 = tpu.matmul %83, %85, %cst_41 {dimension_numbers = #tpu.dot_dimension_numbers<[1], [0], [0], [1], [0, 0, 1, 1], [], []>} : vector<32x256xbf16>, vector<256x128xbf16>, vector<32x128xf32> -> vector<32x128xf32>
    %87 = arith.addf %80, %86 : vector<32x128xf32>
    %88 = arith.addf %3, %87 : vector<32x128xf32>
    %89 = arith.mulf %88, %88 : vector<32x128xf32>
    %90 = tpu.concatenate %88, %89 in 0 : vector<32x128xf32>, vector<32x128xf32> -> vector<64x128xf32>
    %c0_42 = arith.constant 0 : index
    %c0_43 = arith.constant 0 : index
    %91 = vector.load %arg8[%c0_42, %c0_43] : memref<128x8xf32, #tpu.memory_space<vmem>>, vector<128x8xf32>
    %cst_44 = arith.constant dense<0.000000e+00> : vector<64x8xf32>
    %92 = tpu.matmul %90, %91, %cst_44 {dimension_numbers = #tpu.dot_dimension_numbers<[1], [0], [0], [1], [0, 0, 1, 1], [], []>} : vector<64x128xf32>, vector<128x8xf32>, vector<64x8xf32> -> vector<64x8xf32>
    %93 = vector.shape_cast %92 : vector<64x8xf32> to vector<4x16x8xf32>
    %cst_45 = arith.constant dense<0.000000e+00> : vector<4x8xf32>
    %94 = vector.multi_reduction <add>, %93, %cst_45 [1] : vector<4x16x8xf32> to vector<4x8xf32>
    %95 = vector.extract_strided_slice %94 {offsets = [0, 0], sizes = [2, 8], strides = [1, 1]} : vector<4x8xf32> to vector<2x8xf32>
    %cst_46 = arith.constant 3.906250e-03 : f32
    %96 = vector.broadcast %cst_46 : f32 to vector<2x8xf32>
    %97 = arith.mulf %95, %96 : vector<2x8xf32>
    %98 = vector.extract_strided_slice %94 {offsets = [2, 0], sizes = [2, 8], strides = [1, 1]} : vector<4x8xf32> to vector<2x8xf32>
    %cst_47 = arith.constant 3.906250e-03 : f32
    %99 = vector.broadcast %cst_47 : f32 to vector<2x8xf32>
    %100 = arith.mulf %98, %99 : vector<2x8xf32>
    %101 = arith.mulf %97, %97 : vector<2x8xf32>
    %102 = arith.subf %100, %101 : vector<2x8xf32>
    %cst_48 = arith.constant 0.000000e+00 : f32
    %103 = vector.broadcast %cst_48 : f32 to vector<2x8xf32>
    %104 = arith.maximumf %102, %103 : vector<2x8xf32>
    %cst_49 = arith.constant 9.99999974E-6 : f32
    %105 = vector.broadcast %cst_49 : f32 to vector<2x8xf32>
    %106 = arith.addf %104, %105 : vector<2x8xf32>
    %107 = math.rsqrt %106 : vector<2x8xf32>
    %108 = arith.mulf %97, %107 : vector<2x8xf32>
    %109 = tpu.concatenate %107, %108 in 0 : vector<2x8xf32>, vector<2x8xf32> -> vector<4x8xf32>
    %c0_50 = arith.constant 0 : index
    %c0_51 = arith.constant 0 : index
    %110 = vector.load %arg9[%c0_50, %c0_51] : memref<8x128xf32, #tpu.memory_space<vmem>>, vector<8x128xf32>
    %cst_52 = arith.constant dense<0.000000e+00> : vector<4x128xf32>
    %111 = tpu.matmul %109, %110, %cst_52 {dimension_numbers = #tpu.dot_dimension_numbers<[1], [0], [0], [1], [0, 0, 1, 1], [], []>} : vector<4x8xf32>, vector<8x128xf32>, vector<4x128xf32> -> vector<4x128xf32>
    %112 = vector.extract_strided_slice %111 {offsets = [0, 0], sizes = [2, 128], strides = [1, 1]} : vector<4x128xf32> to vector<2x128xf32>
    %c0_53 = arith.constant 0 : index
    %c0_54 = arith.constant 0 : index
    %113 = vector.load %arg10[%c0_53, %c0_54] : memref<1x128xf32, #tpu.memory_space<vmem>>, vector<1x128xf32>
    %114 = vector.extract_strided_slice %111 {offsets = [2, 0], sizes = [2, 128], strides = [1, 1]} : vector<4x128xf32> to vector<2x128xf32>
    %115 = vector.broadcast %113 : vector<1x128xf32> to vector<2x128xf32>
    %116 = arith.subf %115, %114 : vector<2x128xf32>
    %117 = vector.shape_cast %88 : vector<32x128xf32> to vector<2x16x128xf32>
    %118 = vector.shape_cast %112 : vector<2x128xf32> to vector<2x1x128xf32>
    %119 = vector.broadcast %118 : vector<2x1x128xf32> to vector<2x16x128xf32>
    %120 = arith.mulf %117, %119 : vector<2x16x128xf32>
    %121 = vector.shape_cast %116 : vector<2x128xf32> to vector<2x1x128xf32>
    %122 = vector.broadcast %121 : vector<2x1x128xf32> to vector<2x16x128xf32>
    %123 = arith.addf %120, %122 : vector<2x16x128xf32>
    %124 = vector.shape_cast %123 : vector<2x16x128xf32> to vector<32x128xf32>
    %125 = arith.addf %1, %124 : vector<32x128xf32>
    %cst_55 = arith.constant 0.000000e+00 : f32
    %126 = vector.broadcast %cst_55 : f32 to vector<32x128xf32>
    %127 = arith.maximumf %125, %126 : vector<32x128xf32>
    %128 = arith.mulf %127, %127 : vector<32x128xf32>
    %129 = tpu.concatenate %127, %128 in 0 : vector<32x128xf32>, vector<32x128xf32> -> vector<64x128xf32>
    %c0_56 = arith.constant 0 : index
    %c0_57 = arith.constant 0 : index
    %130 = vector.load %arg8[%c0_56, %c0_57] : memref<128x8xf32, #tpu.memory_space<vmem>>, vector<128x8xf32>
    %cst_58 = arith.constant dense<0.000000e+00> : vector<64x8xf32>
    %131 = tpu.matmul %129, %130, %cst_58 {dimension_numbers = #tpu.dot_dimension_numbers<[1], [0], [0], [1], [0, 0, 1, 1], [], []>} : vector<64x128xf32>, vector<128x8xf32>, vector<64x8xf32> -> vector<64x8xf32>
    %132 = vector.shape_cast %131 : vector<64x8xf32> to vector<4x16x8xf32>
    %cst_59 = arith.constant dense<0.000000e+00> : vector<4x8xf32>
    %133 = vector.multi_reduction <add>, %132, %cst_59 [1] : vector<4x16x8xf32> to vector<4x8xf32>
    %134 = vector.extract_strided_slice %133 {offsets = [0, 0], sizes = [2, 8], strides = [1, 1]} : vector<4x8xf32> to vector<2x8xf32>
    %cst_60 = arith.constant 3.906250e-03 : f32
    %135 = vector.broadcast %cst_60 : f32 to vector<2x8xf32>
    %136 = arith.mulf %134, %135 : vector<2x8xf32>
    %137 = vector.extract_strided_slice %133 {offsets = [2, 0], sizes = [2, 8], strides = [1, 1]} : vector<4x8xf32> to vector<2x8xf32>
    %cst_61 = arith.constant 3.906250e-03 : f32
    %138 = vector.broadcast %cst_61 : f32 to vector<2x8xf32>
    %139 = arith.mulf %137, %138 : vector<2x8xf32>
    %140 = arith.mulf %136, %136 : vector<2x8xf32>
    %141 = arith.subf %139, %140 : vector<2x8xf32>
    %cst_62 = arith.constant 0.000000e+00 : f32
    %142 = vector.broadcast %cst_62 : f32 to vector<2x8xf32>
    %143 = arith.maximumf %141, %142 : vector<2x8xf32>
    %cst_63 = arith.constant 9.99999974E-6 : f32
    %144 = vector.broadcast %cst_63 : f32 to vector<2x8xf32>
    %145 = arith.addf %143, %144 : vector<2x8xf32>
    %146 = math.rsqrt %145 : vector<2x8xf32>
    %147 = arith.mulf %136, %146 : vector<2x8xf32>
    %148 = tpu.concatenate %146, %147 in 0 : vector<2x8xf32>, vector<2x8xf32> -> vector<4x8xf32>
    %c0_64 = arith.constant 0 : index
    %c0_65 = arith.constant 0 : index
    %149 = vector.load %arg11[%c0_64, %c0_65] : memref<8x128xf32, #tpu.memory_space<vmem>>, vector<8x128xf32>
    %cst_66 = arith.constant dense<0.000000e+00> : vector<4x128xf32>
    %150 = tpu.matmul %148, %149, %cst_66 {dimension_numbers = #tpu.dot_dimension_numbers<[1], [0], [0], [1], [0, 0, 1, 1], [], []>} : vector<4x8xf32>, vector<8x128xf32>, vector<4x128xf32> -> vector<4x128xf32>
    %151 = vector.extract_strided_slice %150 {offsets = [0, 0], sizes = [2, 128], strides = [1, 1]} : vector<4x128xf32> to vector<2x128xf32>
    %c0_67 = arith.constant 0 : index
    %c0_68 = arith.constant 0 : index
    %152 = vector.load %arg12[%c0_67, %c0_68] : memref<1x128xf32, #tpu.memory_space<vmem>>, vector<1x128xf32>
    %153 = vector.extract_strided_slice %150 {offsets = [2, 0], sizes = [2, 128], strides = [1, 1]} : vector<4x128xf32> to vector<2x128xf32>
    %154 = vector.broadcast %152 : vector<1x128xf32> to vector<2x128xf32>
    %155 = arith.subf %154, %153 : vector<2x128xf32>
    %156 = vector.shape_cast %127 : vector<32x128xf32> to vector<2x16x128xf32>
    %157 = vector.shape_cast %151 : vector<2x128xf32> to vector<2x1x128xf32>
    %158 = vector.broadcast %157 : vector<2x1x128xf32> to vector<2x16x128xf32>
    %159 = arith.mulf %156, %158 : vector<2x16x128xf32>
    %160 = vector.shape_cast %155 : vector<2x128xf32> to vector<2x1x128xf32>
    %161 = vector.broadcast %160 : vector<2x1x128xf32> to vector<2x16x128xf32>
    %162 = arith.addf %159, %161 : vector<2x16x128xf32>
    %163 = vector.shape_cast %162 : vector<2x16x128xf32> to vector<32x128xf32>
    %164 = vector.shape_cast %163 : vector<32x128xf32> to vector<2x16x128xf32>
    %c0_69 = arith.constant 0 : index
    %c0_70 = arith.constant 0 : index
    %c0_71 = arith.constant 0 : index
    %165 = vector.load %arg13[%c0_69, %c0_70, %c0_71] : memref<2x16x128xf32, #tpu.memory_space<vmem>>, vector<2x16x128xf32>
    tpu.vector_store %arg13[%c0_69, %c0_70, %c0_71], %164 {strides = array<i32>} : memref<2x16x128xf32, #tpu.memory_space<vmem>>, vector<2x16x128xf32>,
    return
  }
  func.func @transform_0(%arg0: i32) -> (i32, i32, i32) {
    %c0_i32 = arith.constant 0 : i32
    %c0_i32_0 = arith.constant 0 : i32
    %c0_i32_1 = arith.constant 0 : i32
    return %arg0, %c0_i32, %c0_i32_0 : i32, i32, i32
  }
  func.func @transform_1(%arg0: i32) -> (i32, i32, i32) {
    %c0_i32 = arith.constant 0 : i32
    %c0_i32_0 = arith.constant 0 : i32
    %c0_i32_1 = arith.constant 0 : i32
    return %arg0, %c0_i32, %c0_i32_0 : i32, i32, i32
  }
  func.func @transform_2(%arg0: i32) -> (i32, i32, i32) {
    %c0_i32 = arith.constant 0 : i32
    %c0_i32_0 = arith.constant 0 : i32
    %c0_i32_1 = arith.constant 0 : i32
    %c0_i32_2 = arith.constant 0 : i32
    return %c0_i32, %c0_i32_0, %c0_i32_1 : i32, i32, i32
  }
  func.func @transform_3(%arg0: i32) -> (i32, i32, i32) {
    %c0_i32 = arith.constant 0 : i32
    %c0_i32_0 = arith.constant 0 : i32
    %c0_i32_1 = arith.constant 0 : i32
    %c0_i32_2 = arith.constant 0 : i32
    return %c0_i32, %c0_i32_0, %c0_i32_1 : i32, i32, i32
  }
  func.func @transform_4(%arg0: i32) -> (i32, i32) {
    %c0_i32 = arith.constant 0 : i32
    %c0_i32_0 = arith.constant 0 : i32
    %c0_i32_1 = arith.constant 0 : i32
    return %c0_i32, %c0_i32_0 : i32, i32
  }
  func.func @transform_5(%arg0: i32) -> (i32, i32) {
    %c0_i32 = arith.constant 0 : i32
    %c0_i32_0 = arith.constant 0 : i32
    %c0_i32_1 = arith.constant 0 : i32
    return %c0_i32, %c0_i32_0 : i32, i32
  }
  func.func @transform_6(%arg0: i32) -> (i32, i32) {
    %c0_i32 = arith.constant 0 : i32
    %c0_i32_0 = arith.constant 0 : i32
    %c0_i32_1 = arith.constant 0 : i32
    return %c0_i32, %c0_i32_0 : i32, i32
  }
  func.func @transform_7(%arg0: i32) -> (i32, i32) {
    %c0_i32 = arith.constant 0 : i32
    %c0_i32_0 = arith.constant 0 : i32
    %c0_i32_1 = arith.constant 0 : i32
    return %c0_i32, %c0_i32_0 : i32, i32
  }
  func.func @transform_8(%arg0: i32) -> (i32, i32) {
    %c0_i32 = arith.constant 0 : i32
    %c0_i32_0 = arith.constant 0 : i32
    %c0_i32_1 = arith.constant 0 : i32
    return %c0_i32, %c0_i32_0 : i32, i32
  }
  func.func @transform_9(%arg0: i32) -> (i32, i32) {
    %c0_i32 = arith.constant 0 : i32
    %c0_i32_0 = arith.constant 0 : i32
    %c0_i32_1 = arith.constant 0 : i32
    return %c0_i32, %c0_i32_0 : i32, i32
  }
  func.func @transform_10(%arg0: i32) -> (i32, i32) {
    %c0_i32 = arith.constant 0 : i32
    %c0_i32_0 = arith.constant 0 : i32
    %c0_i32_1 = arith.constant 0 : i32
    return %c0_i32, %c0_i32_0 : i32, i32
  }
  func.func @transform_11(%arg0: i32) -> (i32, i32) {
    %c0_i32 = arith.constant 0 : i32
    %c0_i32_0 = arith.constant 0 : i32
    %c0_i32_1 = arith.constant 0 : i32
    return %c0_i32, %c0_i32_0 : i32, i32
  }
  func.func @transform_12(%arg0: i32) -> (i32, i32, i32) {
    %c0_i32 = arith.constant 0 : i32
    %c0_i32_0 = arith.constant 0 : i32
    %c0_i32_1 = arith.constant 0 : i32
    return %arg0, %c0_i32, %c0_i32_0 : i32, i32, i32
  }
}

</mosaic_0001>

<llo_original>
// kernel: tpu_custom_call.1
$region0: #{tpu_custom_call.1}
  #allocation0 [shape = 'u32[]', space=smem, size = 0x4, offset = 0x4, fixed_abs, tag = 'smem constant byte address 0x4 - core index']
  #allocation1 [shape = 'u32[144,128]{1,0:T(1,128)}', space=vmem, size = 0x12000, scoped, tag = 'internal scratch']
  %s0 = inlined_call_operand.hbm [shape: f32[4,16,128], index: 0, kind: input, shape index: {}]
  %s1 = inlined_call_operand.hbm [shape: f32[4,16,128], index: 1, kind: input, shape index: {}]
  %s2 = inlined_call_operand.vmem [shape: bf16[3,128,256], index: 2, kind: input, shape index: {}]
  %s3 = inlined_call_operand.hbm [shape: bf16[3,256,128], index: 3, kind: input, shape index: {}]
  %s4 = inlined_call_operand.vmem [shape: f32[256,8], index: 4, kind: input, shape index: {}]
  %s5 = inlined_call_operand.vmem [shape: f32[8,256], index: 5, kind: input, shape index: {}]
  %s6 = inlined_call_operand.vmem [shape: f32[1,256], index: 6, kind: input, shape index: {}]
  %s7 = inlined_call_operand.vmem [shape: f32[128,8], index: 7, kind: input, shape index: {}]
  %s8 = inlined_call_operand.vmem [shape: f32[8,128], index: 8, kind: input, shape index: {}]
  %s9 = inlined_call_operand.vmem [shape: f32[1,128], index: 9, kind: input, shape index: {}]
  %s10 = inlined_call_operand.vmem [shape: f32[8,128], index: 10, kind: input, shape index: {}]
  %s11 = inlined_call_operand.vmem [shape: f32[1,128], index: 11, kind: input, shape index: {}]
  %s12 = inlined_call_operand.hbm [shape: f32[4,16,128], index: 12, kind: output, shape index: {}]
  %s13 = sld [smem:[#allocation0]]
  $region93: #{tpu_custom_call.1} parent=0
    _
  %s15 = ssub.s32 1, %s13
  %s16 = scalar_select 0, %s15, %s13
  $region1: #{tpu_custom_call.1} parent=0
    #allocation2 [shape = 'u8[32768]{0}', space=vmem, size = 0x8000, scoped, tag = 'input window, operand 0']
    #allocation3 [shape = 's32[2]{0}', space=sflag, size = 0x8, scoped, tag = 'scoped memory for tpu_custom_call.1']
    #allocation4 [shape = 's32[2]{0}', space=sflag, size = 0x8, scoped, tag = 'scoped memory for tpu_custom_call.1']
    #allocation5 [shape = 'u8[32768]{0}', space=vmem, size = 0x8000, scoped, tag = 'input window, operand 1']
    #allocation6 [shape = 's32[2]{0}', space=sflag, size = 0x8, scoped, tag = 'scoped memory for tpu_custom_call.1']
    #allocation7 [shape = 'u8[196608]{0}', space=vmem, size = 0x30000, scoped, tag = 'input window, operand 3, single buffered']
    #allocation8 [shape = 'u8[32768]{0}', space=vmem, size = 0x8000, scoped, tag = 'output window, operand 0']
    %17 = vsyncpa [#allocation3], 0
    %s18 = scalar_lea.sflag [#allocation3], 1
    %19 = vsyncpa %s18, 0
    %20 = vsyncpa [#allocation6], 0
    %s21 = scalar_lea.sflag [#allocation6], 1
    %22 = vsyncpa %s21, 0
    %23 = vsyncpa [#allocation4], 0
    %s24 = scalar_lea.sflag [#allocation4], 1
    %25 = vsyncpa %s24, 0
    loop: start=0, step=1, limit=4
    $region2: #{tpu_custom_call.1} parent=1 // loop_pre_header
      _
    $region3: #{tpu_custom_call.1} parent=1 // loop_header
      %s27 = sphi 0, %s31
      %p28 = scmp.ge.s32.totalorder %s27, 4
      %s37 = sphi 0, %s39
      %s40 = sphi 0, %s37
      %s41 = sphi 0, %s40
      %s57 = sphi 0, %s41
      %s63 = sphi 0, %s65
      %s66 = sphi 0, %s63
      %s67 = sphi 0, %s66
      %s83 = sphi 0, %s67
      %s87 = sphi 0, %s87
      %s89 = sphi 0, %s87
      %s90 = sphi 0, %s89
      %s104 = sphi 0, %s90
      %s108 = sphi 0, %s108
      %s110 = sphi 0, %s108
      %s111 = sphi 0, %s110
      %s125 = sphi 0, %s111
      %s129 = sphi 0, %s129
      %s131 = sphi 0, %s129
      %s132 = sphi 0, %s131
      %s146 = sphi 0, %s132
      %s150 = sphi 0, %s150
      %s152 = sphi 0, %s150
      %s153 = sphi 0, %s152
      %s167 = sphi 0, %s153
      %s171 = sphi 0, %s171
      %s173 = sphi 0, %s171
      %s174 = sphi 0, %s173
      %s188 = sphi 0, %s174
      %s192 = sphi 0, %s192
      %s194 = sphi 0, %s192
      %s195 = sphi 0, %s194
      %s209 = sphi 0, %s195
      %s213 = sphi 0, %s213
      %s215 = sphi 0, %s213
      %s216 = sphi 0, %s215
      %s230 = sphi 0, %s216
      %s234 = sphi 0, %s234
      %s236 = sphi 0, %s234
      %s237 = sphi 0, %s236
      %s251 = sphi 0, %s237
      %s255 = sphi 0, %s255
      %s257 = sphi 0, %s255
      %s258 = sphi 0, %s257
      %s272 = sphi 0, %s258
      %s276 = sphi 0, %s276
      %s278 = sphi 0, %s276
      %s279 = sphi 0, %s278
      %s293 = sphi 0, %s279
      %s299 = sphi 0, %s301
      %s302 = sphi 0, %s299
      %s303 = sphi 0, %s302
      %s319 = sphi 0, %s303
    $region4: #{tpu_custom_call.1} parent=1 // loop_header_branch
      %30 = sbr.rel (%p28) target = $region8
    $region5: #{tpu_custom_call.1} parent=1 // loop_body
      %s32 = ssub.s32 %s27, 1
      %s33 = ssub.s32 %s27, 2
      %s34 = sadd.s32 %s27, 1
      %s35 = ssub.s32 %s27, %s34
      %p36 = scmp.eq.s32.totalorder %s35, 0
      %s38 = sadd.s32 %s37, 1
      %s39 = scalar_select %p36, %s37, %s38
      %p42 = pneg %p36
      %p43 = scmp.eq.s32.totalorder %s27, 1
      %p44 = por %p42, %p43
      %p45 = scmp.ne.s32.totalorder %s37, %s40
      %p46 = scmp.eq.s32.totalorder %s27, 0
      %p47 = por %p45, %p46
      %p48 = scmp.ne.s32.totalorder %s37, %s40
      %p49 = scmp.eq.s32.totalorder %s32, 1
      %p50 = por %p48, %p49
      %p51 = scmp.ne.s32.totalorder %s40, %s41
      %p52 = scmp.eq.s32.totalorder %s32, 0
      %p53 = por %p51, %p52
      %p54 = scmp.ne.s32.totalorder %s40, %s41
      %p55 = scmp.eq.s32.totalorder %s33, 1
      %p56 = por %p54, %p55
      %p58 = scmp.ne.s32.totalorder %s41, %s57
      %p59 = scmp.eq.s32.totalorder %s33, 0
      %p60 = por %p58, %p59
      %s61 = ssub.s32 %s27, %s34
      %p62 = scmp.eq.s32.totalorder %s61, 0
      %s64 = sadd.s32 %s63, 1
      %s65 = scalar_select %p62, %s63, %s64
      %p68 = pneg %p62
      %p69 = scmp.eq.s32.totalorder %s27, 1
      %p70 = por %p68, %p69
      %p71 = scmp.ne.s32.totalorder %s63, %s66
      %p72 = scmp.eq.s32.totalorder %s27, 0
      %p73 = por %p71, %p72
      %p74 = scmp.ne.s32.totalorder %s63, %s66
      %p75 = scmp.eq.s32.totalorder %s32, 1
      %p76 = por %p74, %p75
      %p77 = scmp.ne.s32.totalorder %s66, %s67
      %p78 = scmp.eq.s32.totalorder %s32, 0
      %p79 = por %p77, %p78
      %p80 = scmp.ne.s32.totalorder %s66, %s67
      %p81 = scmp.eq.s32.totalorder %s33, 1
      %p82 = por %p80, %p81
      %p84 = scmp.ne.s32.totalorder %s67, %s83
      %p85 = scmp.eq.s32.totalorder %s33, 0
      %p86 = por %p84, %p85
      %s88 = sadd.s32 %s87, 1
      %p91 = scmp.eq.s32.totalorder %s27, 1
      %p92 = scmp.ne.s32.totalorder %s87, %s89
      %p93 = scmp.eq.s32.totalorder %s27, 0
      %p94 = por %p92, %p93
      %p95 = scmp.ne.s32.totalorder %s87, %s89
      %p96 = scmp.eq.s32.totalorder %s32, 1
      %p97 = por %p95, %p96
      %p98 = scmp.ne.s32.totalorder %s89, %s90
      %p99 = scmp.eq.s32.totalorder %s32, 0
      %p100 = por %p98, %p99
      %p101 = scmp.ne.s32.totalorder %s89, %s90
      %p102 = scmp.eq.s32.totalorder %s33, 1
      %p103 = por %p101, %p102
      %p105 = scmp.ne.s32.totalorder %s90, %s104
      %p106 = scmp.eq.s32.totalorder %s33, 0
      %p107 = por %p105, %p106
      %s109 = sadd.s32 %s108, 1
      %p112 = scmp.eq.s32.totalorder %s27, 1
      %p113 = scmp.ne.s32.totalorder %s108, %s110
      %p114 = scmp.eq.s32.totalorder %s27, 0
      %p115 = por %p113, %p114
      %p116 = scmp.ne.s32.totalorder %s108, %s110
      %p117 = scmp.eq.s32.totalorder %s32, 1
      %p118 = por %p116, %p117
      %p119 = scmp.ne.s32.totalorder %s110, %s111
      %p120 = scmp.eq.s32.totalorder %s32, 0
      %p121 = por %p119, %p120
      %p122 = scmp.ne.s32.totalorder %s110, %s111
      %p123 = scmp.eq.s32.totalorder %s33, 1
      %p124 = por %p122, %p123
      %p126 = scmp.ne.s32.totalorder %s111, %s125
      %p127 = scmp.eq.s32.totalorder %s33, 0
      %p128 = por %p126, %p127
      %s130 = sadd.s32 %s129, 1
      %p133 = scmp.eq.s32.totalorder %s27, 1
      %p134 = scmp.ne.s32.totalorder %s129, %s131
      %p135 = scmp.eq.s32.totalorder %s27, 0
      %p136 = por %p134, %p135
      %p137 = scmp.ne.s32.totalorder %s129, %s131
      %p138 = scmp.eq.s32.totalorder %s32, 1
      %p139 = por %p137, %p138
      %p140 = scmp.ne.s32.totalorder %s131, %s132
      %p141 = scmp.eq.s32.totalorder %s32, 0
      %p142 = por %p140, %p141
      %p143 = scmp.ne.s32.totalorder %s131, %s132
      %p144 = scmp.eq.s32.totalorder %s33, 1
      %p145 = por %p143, %p144
      %p147 = scmp.ne.s32.totalorder %s132, %s146
      %p148 = scmp.eq.s32.totalorder %s33, 0
      %p149 = por %p147, %p148
      %s151 = sadd.s32 %s150, 1
      %p154 = scmp.eq.s32.totalorder %s27, 1
      %p155 = scmp.ne.s32.totalorder %s150, %s152
      %p156 = scmp.eq.s32.totalorder %s27, 0
      %p157 = por %p155, %p156
      %p158 = scmp.ne.s32.totalorder %s150, %s152
      %p159 = scmp.eq.s32.totalorder %s32, 1
      %p160 = por %p158, %p159
      %p161 = scmp.ne.s32.totalorder %s152, %s153
      %p162 = scmp.eq.s32.totalorder %s32, 0
      %p163 = por %p161, %p162
      %p164 = scmp.ne.s32.totalorder %s152, %s153
      %p165 = scmp.eq.s32.totalorder %s33, 1
      %p166 = por %p164, %p165
      %p168 = scmp.ne.s32.totalorder %s153, %s167
      %p169 = scmp.eq.s32.totalorder %s33, 0
      %p170 = por %p168, %p169
      %s172 = sadd.s32 %s171, 1
      %p175 = scmp.eq.s32.totalorder %s27, 1
      %p176 = scmp.ne.s32.totalorder %s171, %s173
      %p177 = scmp.eq.s32.totalorder %s27, 0
      %p178 = por %p176, %p177
      %p179 = scmp.ne.s32.totalorder %s171, %s173
      %p180 = scmp.eq.s32.totalorder %s32, 1
      %p181 = por %p179, %p180
      %p182 = scmp.ne.s32.totalorder %s173, %s174
      %p183 = scmp.eq.s32.totalorder %s32, 0
      %p184 = por %p182, %p183
      %p185 = scmp.ne.s32.totalorder %s173, %s174
      %p186 = scmp.eq.s32.totalorder %s33, 1
      %p187 = por %p185, %p186
      %p189 = scmp.ne.s32.totalorder %s174, %s188
      %p190 = scmp.eq.s32.totalorder %s33, 0
      %p191 = por %p189, %p190
      %s193 = sadd.s32 %s192, 1
      %p196 = scmp.eq.s32.totalorder %s27, 1
      %p197 = scmp.ne.s32.totalorder %s192, %s194
      %p198 = scmp.eq.s32.totalorder %s27, 0
      %p199 = por %p197, %p198
      %p200 = scmp.ne.s32.totalorder %s192, %s194
      %p201 = scmp.eq.s32.totalorder %s32, 1
      %p202 = por %p200, %p201
      %p203 = scmp.ne.s32.totalorder %s194, %s195
      %p204 = scmp.eq.s32.totalorder %s32, 0
      %p205 = por %p203, %p204
      %p206 = scmp.ne.s32.totalorder %s194, %s195
      %p207 = scmp.eq.s32.totalorder %s33, 1
      %p208 = por %p206, %p207
      %p210 = scmp.ne.s32.totalorder %s195, %s209
      %p211 = scmp.eq.s32.totalorder %s33, 0
      %p212 = por %p210, %p211
      %s214 = sadd.s32 %s213, 1
      %p217 = scmp.eq.s32.totalorder %s27, 1
      %p218 = scmp.ne.s32.totalorder %s213, %s215
      %p219 = scmp.eq.s32.totalorder %s27, 0
      %p220 = por %p218, %p219
      %p221 = scmp.ne.s32.totalorder %s213, %s215
      %p222 = scmp.eq.s32.totalorder %s32, 1
      %p223 = por %p221, %p222
      %p224 = scmp.ne.s32.totalorder %s215, %s216
      %p225 = scmp.eq.s32.totalorder %s32, 0
      %p226 = por %p224, %p225
      %p227 = scmp.ne.s32.totalorder %s215, %s216
      %p228 = scmp.eq.s32.totalorder %s33, 1
      %p229 = por %p227, %p228
      %p231 = scmp.ne.s32.totalorder %s216, %s230
      %p232 = scmp.eq.s32.totalorder %s33, 0
      %p233 = por %p231, %p232
      %s235 = sadd.s32 %s234, 1
      %p238 = scmp.eq.s32.totalorder %s27, 1
      %p239 = scmp.ne.s32.totalorder %s234, %s236
      %p240 = scmp.eq.s32.totalorder %s27, 0
      %p241 = por %p239, %p240
      %p242 = scmp.ne.s32.totalorder %s234, %s236
      %p243 = scmp.eq.s32.totalorder %s32, 1
      %p244 = por %p242, %p243
      %p245 = scmp.ne.s32.totalorder %s236, %s237
      %p246 = scmp.eq.s32.totalorder %s32, 0
      %p247 = por %p245, %p246
      %p248 = scmp.ne.s32.totalorder %s236, %s237
      %p249 = scmp.eq.s32.totalorder %s33, 1
      %p250 = por %p248, %p249
      %p252 = scmp.ne.s32.totalorder %s237, %s251
      %p253 = scmp.eq.s32.totalorder %s33, 0
      %p254 = por %p252, %p253
      %s256 = sadd.s32 %s255, 1
      %p259 = scmp.eq.s32.totalorder %s27, 1
      %p260 = scmp.ne.s32.totalorder %s255, %s257
      %p261 = scmp.eq.s32.totalorder %s27, 0
      %p262 = por %p260, %p261
      %p263 = scmp.ne.s32.totalorder %s255, %s257
      %p264 = scmp.eq.s32.totalorder %s32, 1
      %p265 = por %p263, %p264
      %p266 = scmp.ne.s32.totalorder %s257, %s258
      %p267 = scmp.eq.s32.totalorder %s32, 0
      %p268 = por %p266, %p267
      %p269 = scmp.ne.s32.totalorder %s257, %s258
      %p270 = scmp.eq.s32.totalorder %s33, 1
      %p271 = por %p269, %p270
      %p273 = scmp.ne.s32.totalorder %s258, %s272
      %p274 = scmp.eq.s32.totalorder %s33, 0
      %p275 = por %p273, %p274
      %s277 = sadd.s32 %s276, 1
      %p280 = scmp.eq.s32.totalorder %s27, 1
      %p281 = scmp.ne.s32.totalorder %s276, %s278
      %p282 = scmp.eq.s32.totalorder %s27, 0
      %p283 = por %p281, %p282
      %p284 = scmp.ne.s32.totalorder %s276, %s278
      %p285 = scmp.eq.s32.totalorder %s32, 1
      %p286 = por %p284, %p285
      %p287 = scmp.ne.s32.totalorder %s278, %s279
      %p288 = scmp.eq.s32.totalorder %s32, 0
      %p289 = por %p287, %p288
      %p290 = scmp.ne.s32.totalorder %s278, %s279
      %p291 = scmp.eq.s32.totalorder %s33, 1
      %p292 = por %p290, %p291
      %p294 = scmp.ne.s32.totalorder %s279, %s293
      %p295 = scmp.eq.s32.totalorder %s33, 0
      %p296 = por %p294, %p295
      %s297 = ssub.s32 %s27, %s34
      %p298 = scmp.eq.s32.totalorder %s297, 0
      %s300 = sadd.s32 %s299, 1
      %s301 = scalar_select %p298, %s299, %s300
      %p304 = pneg %p298
      %p305 = scmp.eq.s32.totalorder %s27, 1
      %p306 = por %p304, %p305
      %p307 = scmp.ne.s32.totalorder %s299, %s302
      %p308 = scmp.eq.s32.totalorder %s27, 0
      %p309 = por %p307, %p308
      %p310 = scmp.ne.s32.totalorder %s299, %s302
      %p311 = scmp.eq.s32.totalorder %s32, 1
      %p312 = por %p310, %p311
      %p313 = scmp.ne.s32.totalorder %s302, %s303
      %p314 = scmp.eq.s32.totalorder %s32, 0
      %p315 = por %p313, %p314
      %p316 = scmp.ne.s32.totalorder %s302, %s303
      %p317 = scmp.eq.s32.totalorder %s33, 1
      %p318 = por %p316, %p317
      %p320 = scmp.ne.s32.totalorder %s303, %s319
      %p321 = scmp.eq.s32.totalorder %s33, 0
      %p322 = por %p320, %p321
      %p323 = scmp.le.s32.totalorder 1, %s27
      %p324 = scmp.lt.s32.totalorder %s27, 3
      %p325 = pnand %p323, %p324
      %p326 = pneg %p325
      // Predicated region
      $region9: #{tpu_custom_call.1} parent=5 // pred_check
        _
      $region10: #{tpu_custom_call.1} parent=5 // pred_check_branch
        %328 = sbr.rel (%p325) target = $region12
      $region11: #{tpu_custom_call.1} parent=5 // pred_region
        %s329 = ssub.s32 %s27, 1
        // Predicated region
        $region13: #{tpu_custom_call.1} parent=11 // pred_check
          %p330 = pneg %p100
        $region14: #{tpu_custom_call.1} parent=11 // pred_check_branch
          %332 = sbr.rel (%p330) target = $region16
        $region15: #{tpu_custom_call.1} parent=11 // pred_region
          _
        $region16: #{tpu_custom_call.1} parent=11 // pred_fallthru
          _
        // Predicated region
        $region17: #{tpu_custom_call.1} parent=11 // pred_check
          %p333 = pneg %p121
        $region18: #{tpu_custom_call.1} parent=11 // pred_check_branch
          %335 = sbr.rel (%p333) target = $region20
        $region19: #{tpu_custom_call.1} parent=11 // pred_region
          %s337 = ssub.s32 6144, 6144
          %338 = vsyncadd [#allocation6], %s337
          %s339 = sshll.u32 [#allocation7], 4
          %s340 = int_to_ptr.vmem [resolvable:$true] %s339
          %345 = dma.hbm_to_vmem [thread:$0]  %s3, 6144, %s340, [#allocation6], 64, 64, 4
        $region20: #{tpu_custom_call.1} parent=11 // pred_fallthru
          _
        // Predicated region
        $region21: #{tpu_custom_call.1} parent=11 // pred_check
          %p346 = pneg %p142
        $region22: #{tpu_custom_call.1} parent=11 // pred_check_branch
          %348 = sbr.rel (%p346) target = $region24
        $region23: #{tpu_custom_call.1} parent=11 // pred_region
          _
        $region24: #{tpu_custom_call.1} parent=11 // pred_fallthru
          _
        // Predicated region
        $region25: #{tpu_custom_call.1} parent=11 // pred_check
          %p349 = pneg %p163
        $region26: #{tpu_custom_call.1} parent=11 // pred_check_branch
          %351 = sbr.rel (%p349) target = $region28
        $region27: #{tpu_custom_call.1} parent=11 // pred_region
          _
        $region28: #{tpu_custom_call.1} parent=11 // pred_fallthru
          _
        // Predicated region
        $region29: #{tpu_custom_call.1} parent=11 // pred_check
          %p352 = pneg %p184
        $region30: #{tpu_custom_call.1} parent=11 // pred_check_branch
          %354 = sbr.rel (%p352) target = $region32
        $region31: #{tpu_custom_call.1} parent=11 // pred_region
          _
        $region32: #{tpu_custom_call.1} parent=11 // pred_fallthru
          _
        // Predicated region
        $region33: #{tpu_custom_call.1} parent=11 // pred_check
          %p355 = pneg %p205
        $region34: #{tpu_custom_call.1} parent=11 // pred_check_branch
          %357 = sbr.rel (%p355) target = $region36
        $region35: #{tpu_custom_call.1} parent=11 // pred_region
          _
        $region36: #{tpu_custom_call.1} parent=11 // pred_fallthru
          _
        // Predicated region
        $region37: #{tpu_custom_call.1} parent=11 // pred_check
          %p358 = pneg %p226
        $region38: #{tpu_custom_call.1} parent=11 // pred_check_branch
          %360 = sbr.rel (%p358) target = $region40
        $region39: #{tpu_custom_call.1} parent=11 // pred_region
          _
        $region40: #{tpu_custom_call.1} parent=11 // pred_fallthru
          _
        // Predicated region
        $region41: #{tpu_custom_call.1} parent=11 // pred_check
          %p361 = pneg %p247
        $region42: #{tpu_custom_call.1} parent=11 // pred_check_branch
          %363 = sbr.rel (%p361) target = $region44
        $region43: #{tpu_custom_call.1} parent=11 // pred_region
          _
        $region44: #{tpu_custom_call.1} parent=11 // pred_fallthru
          _
        // Predicated region
        $region45: #{tpu_custom_call.1} parent=11 // pred_check
          %p364 = pneg %p268
        $region46: #{tpu_custom_call.1} parent=11 // pred_check_branch
          %366 = sbr.rel (%p364) target = $region48
        $region47: #{tpu_custom_call.1} parent=11 // pred_region
          _
        $region48: #{tpu_custom_call.1} parent=11 // pred_fallthru
          _
        // Predicated region
        $region49: #{tpu_custom_call.1} parent=11 // pred_check
          %p367 = pneg %p289
        $region50: #{tpu_custom_call.1} parent=11 // pred_check_branch
          %369 = sbr.rel (%p367) target = $region52
        $region51: #{tpu_custom_call.1} parent=11 // pred_region
          _
        $region52: #{tpu_custom_call.1} parent=11 // pred_fallthru
          _
      $region12: #{tpu_custom_call.1} parent=5 // pred_fallthru
        _
      %p370 = scmp.lt.s32.totalorder %s27, 2
      // Predicated region
      $region53: #{tpu_custom_call.1} parent=5 // pred_check
        %p371 = pneg %p370
      $region54: #{tpu_custom_call.1} parent=5 // pred_check_branch
        %373 = sbr.rel (%p371) target = $region56
      $region55: #{tpu_custom_call.1} parent=5 // pred_region
        // Predicated region
        $region57: #{tpu_custom_call.1} parent=55 // pred_check
          %p374 = pneg %p47
        $region58: #{tpu_custom_call.1} parent=55 // pred_check_branch
          %376 = sbr.rel (%p374) target = $region60
        $region59: #{tpu_custom_call.1} parent=55 // pred_region
          %s377 = sand.u32 %s37, 1
          %s378 = scalar_lea.sflag [#allocation3], %s377
          %s379 = sand.u32 %s37, 1
          %s380 = smul.addr %s379, 32
          %s381 = scalar_lea.vmem [#allocation2], %s380
          %s382 = smul.u32 2, %s27
          %s384 = ssub.s32 512, 512
          %385 = vsyncadd %s378, %s384
          %s386 = smul.addr %s382, 2
          %s387 = smul.addr %s386, 128
          %s388 = scalar_lea.hbm %s0, %s387
          %s389 = sshll.u32 %s381, 4
          %s390 = int_to_ptr.vmem [resolvable:$true] %s389
          %395 = dma.hbm_to_vmem [thread:$0]  %s388, 512, %s390, %s378, 128, 128, 8
        $region60: #{tpu_custom_call.1} parent=55 // pred_fallthru
          _
        // Predicated region
        $region61: #{tpu_custom_call.1} parent=55 // pred_check
          %p396 = pneg %p73
        $region62: #{tpu_custom_call.1} parent=55 // pred_check_branch
          %398 = sbr.rel (%p396) target = $region64
        $region63: #{tpu_custom_call.1} parent=55 // pred_region
          %s399 = sand.u32 %s27, 1
          %s400 = scalar_lea.sflag [#allocation6], %s399
          %s401 = sand.u32 %s63, 1
          %s402 = smul.addr %s401, 32
          %s403 = scalar_lea.vmem [#allocation5], %s402
          %s404 = smul.u32 2, %s27
          %s406 = ssub.s32 512, 512
          %407 = vsyncadd %s400, %s406
          %s408 = smul.addr %s404, 2
          %s409 = smul.addr %s408, 128
          %s410 = scalar_lea.hbm %s1, %s409
          %s411 = sshll.u32 %s403, 4
          %s412 = int_to_ptr.vmem [resolvable:$true] %s411
          %417 = dma.hbm_to_vmem [thread:$0]  %s410, 512, %s412, %s400, 128, 128, 8
        $region64: #{tpu_custom_call.1} parent=55 // pred_fallthru
          _
      $region56: #{tpu_custom_call.1} parent=5 // pred_fallthru
        _
      %p418 = scmp.le.s32.totalorder 1, %s27
      %p419 = scmp.lt.s32.totalorder %s27, 3
      %p420 = pnand %p418, %p419
      %p421 = pneg %p420
      // Predicated region
      $region65: #{tpu_custom_call.1} parent=5 // pred_check
        _
      $region66: #{tpu_custom_call.1} parent=5 // pred_check_branch
        %423 = sbr.rel (%p420) target = $region68
      $region67: #{tpu_custom_call.1} parent=5 // pred_region
        %s424 = ssub.s32 %s27, 1
        %s425 = sand.u32 %s40, 1
        %s426 = scalar_lea.sflag [#allocation3], %s425
        %s427 = sand.u32 %s40, 1
        %s428 = smul.addr %s427, 32
        %s429 = scalar_lea.vmem [#allocation2], %s428
        // Predicated region
        $region69: #{tpu_custom_call.1} parent=67 // pred_check
          %p430 = pneg %p53
        $region70: #{tpu_custom_call.1} parent=67 // pred_check_branch
          %432 = sbr.rel (%p430) target = $region72
        $region71: #{tpu_custom_call.1} parent=67 // pred_region
          %433 = dma.done %s426, 512
        $region72: #{tpu_custom_call.1} parent=67 // pred_fallthru
          _
        %s434 = sand.u32 %s32, 1
        %s435 = scalar_lea.sflag [#allocation6], %s434
        %s436 = sand.u32 %s66, 1
        %s437 = smul.addr %s436, 32
        %s438 = scalar_lea.vmem [#allocation5], %s437
        // Predicated region
        $region73: #{tpu_custom_call.1} parent=67 // pred_check
          %p439 = pneg %p79
        $region74: #{tpu_custom_call.1} parent=67 // pred_check_branch
          %441 = sbr.rel (%p439) target = $region76
        $region75: #{tpu_custom_call.1} parent=67 // pred_region
          %442 = dma.done %s435, 512
        $region76: #{tpu_custom_call.1} parent=67 // pred_fallthru
          _
        // Predicated region
        $region77: #{tpu_custom_call.1} parent=67 // pred_check
          %p443 = pneg %p121
        $region78: #{tpu_custom_call.1} parent=67 // pred_check_branch
          %445 = sbr.rel (%p443) target = $region80
        $region79: #{tpu_custom_call.1} parent=67 // pred_region
          %446 = dma.done [#allocation6], 6144
        $region80: #{tpu_custom_call.1} parent=67 // pred_fallthru
          _
        %s447 = sand.u32 %s40, 1
        %s448 = scalar_lea.sflag [#allocation3], %s447
        %s449 = sand.u32 %s40, 1
        %s450 = smul.addr %s449, 32
        %s451 = scalar_lea.vmem [#allocation2], %s450
        %p452 = pneg %p53
        %p453 = pneg %p50
        %s454 = sand.u32 %s32, 1
        %s455 = scalar_lea.sflag [#allocation6], %s454
        %s456 = sand.u32 %s66, 1
        %s457 = smul.addr %s456, 32
        %s458 = scalar_lea.vmem [#allocation5], %s457
        %p459 = pneg %p79
        %p460 = pneg %p76
        %p461 = pneg %p100
        %p462 = pneg %p97
        %p463 = pneg %p121
        %p464 = pneg %p118
        %p465 = pneg %p142
        %p466 = pneg %p139
        %p467 = pneg %p163
        %p468 = pneg %p160
        %p469 = pneg %p184
        %p470 = pneg %p181
        %p471 = pneg %p205
        %p472 = pneg %p202
        %p473 = pneg %p226
        %p474 = pneg %p223
        %p475 = pneg %p247
        %p476 = pneg %p244
        %p477 = pneg %p268
        %p478 = pneg %p265
        %p479 = pneg %p289
        %p480 = pneg %p286
        %p481 = pneg %p315
        %p482 = pneg %p312
        %s483 = sand.u32 %s302, 1
        %s484 = scalar_lea.sflag [#allocation4], %s483
        %s485 = sand.u32 %s302, 1
        %s486 = smul.addr %s485, 32
        %s487 = scalar_lea.vmem [#allocation8], %s486
        %s488 = smul.u32 2, %s32
        %s489 = smul.u32 2, %s32
        %s490 = smul.u32 2, %s32
        %v492 = vld [vmem:[%s429] sm:$0xff]
        %v493 = vld [vmem:[%s429 + $0x8] sm:$0xff]
        %v494 = vld [vmem:[%s429 + $0x10] sm:$0xff]
        %v495 = vld [vmem:[%s429 + $0x18] sm:$0xff]
        %v496 = vld [vmem:[%s438] sm:$0xff]
        %v497 = vld [vmem:[%s438 + $0x8] sm:$0xff]
        %v498 = vld [vmem:[%s438 + $0x10] sm:$0xff]
        %v499 = vld [vmem:[%s438 + $0x18] sm:$0xff]
        %vm505 = vcmask 1040384
        %v506 = vrot.slane 0.0, 7
        %v507 = vrot.slane %v492, 7
        %v508 = vsel %vm505, %v506, %v507
        %v509 = vrot.slane %v493, 7
        %v510 = vsel %vm505, %v507, %v509
        %v511 = vrot.slane %v494, 7
        %v512 = vsel %vm505, %v506, %v511
        %v513 = vrot.slane %v495, 7
        %v514 = vsel %vm505, %v511, %v513
        %v519 = vpack.c.bf16 %v510, %v508
        %v520 = vpack.c.bf16 %v514, %v512
        %v521 = vld [vmem:[%s2] sm:$0xff]
        %v522 = vld [vmem:[%s2 + $0x8] sm:$0xff]
        %v523 = vld [vmem:[%s2 + $0x10] sm:$0xff]
        %v524 = vld [vmem:[%s2 + $0x18] sm:$0xff]
        %v525 = vld [vmem:[%s2 + $0x20] sm:$0xff]
        %v526 = vld [vmem:[%s2 + $0x28] sm:$0xff]
        %v527 = vld [vmem:[%s2 + $0x30] sm:$0xff]
        %v528 = vld [vmem:[%s2 + $0x38] sm:$0xff]
        %v529 = vld [vmem:[%s2 + $0x40] sm:$0xff]
        %v530 = vld [vmem:[%s2 + $0x48] sm:$0xff]
        %v531 = vld [vmem:[%s2 + $0x50] sm:$0xff]
        %v532 = vld [vmem:[%s2 + $0x58] sm:$0xff]
        %v533 = vld [vmem:[%s2 + $0x60] sm:$0xff]
        %v534 = vld [vmem:[%s2 + $0x68] sm:$0xff]
        %v535 = vld [vmem:[%s2 + $0x70] sm:$0xff]
        %v536 = vld [vmem:[%s2 + $0x78] sm:$0xff]
        %v537 = vpack.c.bf16 %v493, %v492
        %v538 = vpack.c.bf16 %v495, %v494
        %s539 = scalar_lea.vmem %s2, 128
        %v540 = vld [vmem:[%s539] sm:$0xff]
        %v541 = vld [vmem:[%s539 + $0x8] sm:$0xff]
        %v542 = vld [vmem:[%s539 + $0x10] sm:$0xff]
        %v543 = vld [vmem:[%s539 + $0x18] sm:$0xff]
        %v544 = vld [vmem:[%s539 + $0x20] sm:$0xff]
        %v545 = vld [vmem:[%s539 + $0x28] sm:$0xff]
        %v546 = vld [vmem:[%s539 + $0x30] sm:$0xff]
        %v547 = vld [vmem:[%s539 + $0x38] sm:$0xff]
        %v548 = vld [vmem:[%s539 + $0x40] sm:$0xff]
        %v549 = vld [vmem:[%s539 + $0x48] sm:$0xff]
        %v550 = vld [vmem:[%s539 + $0x50] sm:$0xff]
        %v551 = vld [vmem:[%s539 + $0x58] sm:$0xff]
        %v552 = vld [vmem:[%s539 + $0x60] sm:$0xff]
        %v553 = vld [vmem:[%s539 + $0x68] sm:$0xff]
        %v554 = vld [vmem:[%s539 + $0x70] sm:$0xff]
        %v555 = vld [vmem:[%s539 + $0x78] sm:$0xff]
        %v572 = vunpack.c.l.b16 %v540
        %v573 = vunpack.c.h.b16 %v540
        %v574 = vunpack.c.l.b16 %v541
        %v575 = vunpack.c.h.b16 %v541
        %v576 = vunpack.c.l.b16 %v542
        %v577 = vunpack.c.h.b16 %v542
        %v578 = vunpack.c.l.b16 %v543
        %v579 = vunpack.c.h.b16 %v543
        %v580 = vunpack.c.l.b16 %v544
        %v581 = vunpack.c.h.b16 %v544
        %v582 = vunpack.c.l.b16 %v545
        %v583 = vunpack.c.h.b16 %v545
        %v584 = vunpack.c.l.b16 %v546
        %v585 = vunpack.c.h.b16 %v546
        %v586 = vunpack.c.l.b16 %v547
        %v587 = vunpack.c.h.b16 %v547
        %v588 = vunpack.c.l.b16 %v548
        %v589 = vunpack.c.h.b16 %v548
        %v590 = vunpack.c.l.b16 %v549
        %v591 = vunpack.c.h.b16 %v549
        %v592 = vunpack.c.l.b16 %v550
        %v593 = vunpack.c.h.b16 %v550
        %v594 = vunpack.c.l.b16 %v551
        %v595 = vunpack.c.h.b16 %v551
        %v596 = vunpack.c.l.b16 %v552
        %v597 = vunpack.c.h.b16 %v552
        %v598 = vunpack.c.l.b16 %v553
        %v599 = vunpack.c.h.b16 %v553
        %v600 = vunpack.c.l.b16 %v554
        %v601 = vunpack.c.h.b16 %v554
        %v602 = vunpack.c.l.b16 %v555
        %v603 = vunpack.c.h.b16 %v555
        %v604 = vpack.c.b16 %v574, %v572
        %v605 = vpack.c.b16 %v575, %v573
        %v606 = vpack.c.b16 %v578, %v576
        %v607 = vpack.c.b16 %v579, %v577
        %v608 = vpack.c.b16 %v582, %v580
        %v609 = vpack.c.b16 %v583, %v581
        %v610 = vpack.c.b16 %v586, %v584
        %v611 = vpack.c.b16 %v587, %v585
        %v612 = vpack.c.b16 %v590, %v588
        %v613 = vpack.c.b16 %v591, %v589
        %v614 = vpack.c.b16 %v594, %v592
        %v615 = vpack.c.b16 %v595, %v593
        %v616 = vpack.c.b16 %v598, %v596
        %v617 = vpack.c.b16 %v599, %v597
        %v618 = vpack.c.b16 %v602, %v600
        %v619 = vpack.c.b16 %v603, %v601
        %636 = vmatprep.subr.bf16.mxu0 %v605
        %637 = vmatpush1.bf16.msra.mxu0 %v604
        %638 = vmatprep.subr.bf16.mxu0 %v607
        %639 = vmatpush1.bf16.msra.mxu0 %v606
        %640 = vmatprep.subr.bf16.mxu0 %v609
        %641 = vmatpush1.bf16.msra.mxu0 %v608
        %642 = vmatprep.subr.bf16.mxu0 %v611
        %643 = vmatpush1.bf16.msra.mxu0 %v610
        %644 = vmatprep.subr.bf16.mxu0 %v613
        %645 = vmatpush1.bf16.msra.mxu0 %v612
        %646 = vmatprep.subr.bf16.mxu0 %v615
        %647 = vmatpush1.bf16.msra.mxu0 %v614
        %648 = vmatprep.subr.bf16.mxu0 %v617
        %649 = vmatpush1.bf16.msra.mxu0 %v616
        %650 = vmatprep.subr.bf16.mxu0 %v619
        %651 = vmatpush1.bf16.msra.mxu0 %v618
        %652 = vmatprep.subr.bf16.mxu0 0
        %653 = vmatpush1.bf16.msra.mxu0 0
        %654 = vmatprep.subr.bf16.mxu0 0
        %655 = vmatpush1.bf16.msra.mxu0 0
        %656 = vmatprep.subr.bf16.mxu0 0
        %657 = vmatpush1.bf16.msra.mxu0 0
        %658 = vmatprep.subr.bf16.mxu0 0
        %659 = vmatpush1.bf16.msra.mxu0 0
        %660 = vmatprep.subr.bf16.mxu0 0
        %661 = vmatpush1.bf16.msra.mxu0 0
        %662 = vmatprep.subr.bf16.mxu0 0
        %663 = vmatpush1.bf16.msra.mxu0 0
        %664 = vmatprep.subr.bf16.mxu0 0
        %665 = vmatpush1.bf16.msra.mxu0 0
        %666 = vmatprep.subr.bf16.mxu0 0
        %667 = vmatpush1.bf16.msra.mxu0 0
        %668 = vmatprep.mubr.bf16.mxu0 0
        %669 = vmatmul.mubr.bf16.gmra.mrb[0].mxu0 %v537
        %v670 = vpop.f32.mrb[0].mxu0
        %v671 = vadd.f32 0.0, %v670
        %v672 = vpop.f32.mrb[0].mxu0
        %v673 = vadd.f32 0.0, %v672
        %v674 = vpop.f32.mrb[0].mxu0
        %v675 = vadd.f32 0.0, %v674
        %v676 = vpop.f32.mrb[0].mxu0
        %v677 = vadd.f32 0.0, %v676
        %678 = vmatprep.mubr.bf16.mxu0 0
        %679 = vmatmul.mubr.bf16.gmra.mrb[0].mxu0 %v538
        %v680 = vpop.f32.mrb[0].mxu0
        %v681 = vadd.f32 0.0, %v680
        %v682 = vpop.f32.mrb[0].mxu0
        %v683 = vadd.f32 0.0, %v682
        %v684 = vpop.f32.mrb[0].mxu0
        %v685 = vadd.f32 0.0, %v684
        %v686 = vpop.f32.mrb[0].mxu0
        %v687 = vadd.f32 0.0, %v686
        %688 = vdwg.mxu0
        %v705 = vunpack.c.l.b16 %v521
        %v706 = vunpack.c.h.b16 %v521
        %v707 = vunpack.c.l.b16 %v522
        %v708 = vunpack.c.h.b16 %v522
        %v709 = vunpack.c.l.b16 %v523
        %v710 = vunpack.c.h.b16 %v523
        %v711 = vunpack.c.l.b16 %v524
        %v712 = vunpack.c.h.b16 %v524
        %v713 = vunpack.c.l.b16 %v525
        %v714 = vunpack.c.h.b16 %v525
        %v715 = vunpack.c.l.b16 %v526
        %v716 = vunpack.c.h.b16 %v526
        %v717 = vunpack.c.l.b16 %v527
        %v718 = vunpack.c.h.b16 %v527
        %v719 = vunpack.c.l.b16 %v528
        %v720 = vunpack.c.h.b16 %v528
        %v721 = vunpack.c.l.b16 %v529
        %v722 = vunpack.c.h.b16 %v529
        %v723 = vunpack.c.l.b16 %v530
        %v724 = vunpack.c.h.b16 %v530
        %v725 = vunpack.c.l.b16 %v531
        %v726 = vunpack.c.h.b16 %v531
        %v727 = vunpack.c.l.b16 %v532
        %v728 = vunpack.c.h.b16 %v532
        %v729 = vunpack.c.l.b16 %v533
        %v730 = vunpack.c.h.b16 %v533
        %v731 = vunpack.c.l.b16 %v534
        %v732 = vunpack.c.h.b16 %v534
        %v733 = vunpack.c.l.b16 %v535
        %v734 = vunpack.c.h.b16 %v535
        %v735 = vunpack.c.l.b16 %v536
        %v736 = vunpack.c.h.b16 %v536
        %v737 = vpack.c.b16 %v707, %v705
        %v738 = vpack.c.b16 %v708, %v706
        %v739 = vpack.c.b16 %v711, %v709
        %v740 = vpack.c.b16 %v712, %v710
        %v741 = vpack.c.b16 %v715, %v713
        %v742 = vpack.c.b16 %v716, %v714
        %v743 = vpack.c.b16 %v719, %v717
        %v744 = vpack.c.b16 %v720, %v718
        %v745 = vpack.c.b16 %v723, %v721
        %v746 = vpack.c.b16 %v724, %v722
        %v747 = vpack.c.b16 %v727, %v725
        %v748 = vpack.c.b16 %v728, %v726
        %v749 = vpack.c.b16 %v731, %v729
        %v750 = vpack.c.b16 %v732, %v730
        %v751 = vpack.c.b16 %v735, %v733
        %v752 = vpack.c.b16 %v736, %v734
        %769 = vmatprep.subr.bf16.mxu0 %v738
        %770 = vmatpush1.bf16.msra.mxu0 %v737
        %771 = vmatprep.subr.bf16.mxu0 %v740
        %772 = vmatpush1.bf16.msra.mxu0 %v739
        %773 = vmatprep.subr.bf16.mxu0 %v742
        %774 = vmatpush1.bf16.msra.mxu0 %v741
        %775 = vmatprep.subr.bf16.mxu0 %v744
        %776 = vmatpush1.bf16.msra.mxu0 %v743
        %777 = vmatprep.subr.bf16.mxu0 %v746
        %778 = vmatpush1.bf16.msra.mxu0 %v745
        %779 = vmatprep.subr.bf16.mxu0 %v748
        %780 = vmatpush1.bf16.msra.mxu0 %v747
        %781 = vmatprep.subr.bf16.mxu0 %v750
        %782 = vmatpush1.bf16.msra.mxu0 %v749
        %783 = vmatprep.subr.bf16.mxu0 %v752
        %784 = vmatpush1.bf16.msra.mxu0 %v751
        %785 = vmatprep.subr.bf16.mxu0 0
        %786 = vmatpush1.bf16.msra.mxu0 0
        %787 = vmatprep.subr.bf16.mxu0 0
        %788 = vmatpush1.bf16.msra.mxu0 0
        %789 = vmatprep.subr.bf16.mxu0 0
        %790 = vmatpush1.bf16.msra.mxu0 0
        %791 = vmatprep.subr.bf16.mxu0 0
        %792 = vmatpush1.bf16.msra.mxu0 0
        %793 = vmatprep.subr.bf16.mxu0 0
        %794 = vmatpush1.bf16.msra.mxu0 0
        %795 = vmatprep.subr.bf16.mxu0 0
        %796 = vmatpush1.bf16.msra.mxu0 0
        %797 = vmatprep.subr.bf16.mxu0 0
        %798 = vmatpush1.bf16.msra.mxu0 0
        %799 = vmatprep.subr.bf16.mxu0 0
        %800 = vmatpush1.bf16.msra.mxu0 0
        %801 = vmatprep.mubr.bf16.mxu0 0
        %802 = vmatmul.mubr.bf16.gmra.mrb[0].mxu0 %v519
        %v803 = vpop.f32.mrb[0].mxu0
        %v804 = vadd.f32 %v671, %v803
        %v805 = vpop.f32.mrb[0].mxu0
        %v806 = vadd.f32 %v673, %v805
        %v807 = vpop.f32.mrb[0].mxu0
        %v808 = vadd.f32 %v675, %v807
        %v809 = vpop.f32.mrb[0].mxu0
        %v810 = vadd.f32 %v677, %v809
        %811 = vmatprep.mubr.bf16.mxu0 0
        %812 = vmatmul.mubr.bf16.gmra.mrb[0].mxu0 %v520
        %v813 = vpop.f32.mrb[0].mxu0
        %v814 = vadd.f32 %v681, %v813
        %v815 = vpop.f32.mrb[0].mxu0
        %v816 = vadd.f32 %v683, %v815
        %v817 = vpop.f32.mrb[0].mxu0
        %v818 = vadd.f32 %v685, %v817
        %v819 = vpop.f32.mrb[0].mxu0
        %v820 = vadd.f32 %v687, %v819
        %821 = vdwg.mxu0
        %vm822 = vcmask 1046528
        %v823 = vrot.slane %v492, 1
        %v824 = vrot.slane %v493, 1
        %v825 = vsel %vm822, %v823, %v824
        %v826 = vrot.slane 0.0, 1
        %v827 = vsel %vm822, %v824, %v826
        %v828 = vrot.slane %v494, 1
        %v829 = vrot.slane %v495, 1
        %v830 = vsel %vm822, %v828, %v829
        %v831 = vsel %vm822, %v829, %v826
        %v836 = vpack.c.bf16 %v827, %v825
        %v837 = vpack.c.bf16 %v831, %v830
        %s838 = scalar_lea.vmem %s2, 256
        %v839 = vld [vmem:[%s838] sm:$0xff]
        %v840 = vld [vmem:[%s838 + $0x8] sm:$0xff]
        %v841 = vld [vmem:[%s838 + $0x10] sm:$0xff]
        %v842 = vld [vmem:[%s838 + $0x18] sm:$0xff]
        %v843 = vld [vmem:[%s838 + $0x20] sm:$0xff]
        %v844 = vld [vmem:[%s838 + $0x28] sm:$0xff]
        %v845 = vld [vmem:[%s838 + $0x30] sm:$0xff]
        %v846 = vld [vmem:[%s838 + $0x38] sm:$0xff]
        %v847 = vld [vmem:[%s838 + $0x40] sm:$0xff]
        %v848 = vld [vmem:[%s838 + $0x48] sm:$0xff]
        %v849 = vld [vmem:[%s838 + $0x50] sm:$0xff]
        %v850 = vld [vmem:[%s838 + $0x58] sm:$0xff]
        %v851 = vld [vmem:[%s838 + $0x60] sm:$0xff]
        %v852 = vld [vmem:[%s838 + $0x68] sm:$0xff]
        %v853 = vld [vmem:[%s838 + $0x70] sm:$0xff]
        %v854 = vld [vmem:[%s838 + $0x78] sm:$0xff]
        %v871 = vunpack.c.l.b16 %v839
        %v872 = vunpack.c.h.b16 %v839
        %v873 = vunpack.c.l.b16 %v840
        %v874 = vunpack.c.h.b16 %v840
        %v875 = vunpack.c.l.b16 %v841
        %v876 = vunpack.c.h.b16 %v841
        %v877 = vunpack.c.l.b16 %v842
        %v878 = vunpack.c.h.b16 %v842
        %v879 = vunpack.c.l.b16 %v843
        %v880 = vunpack.c.h.b16 %v843
        %v881 = vunpack.c.l.b16 %v844
        %v882 = vunpack.c.h.b16 %v844
        %v883 = vunpack.c.l.b16 %v845
        %v884 = vunpack.c.h.b16 %v845
        %v885 = vunpack.c.l.b16 %v846
        %v886 = vunpack.c.h.b16 %v846
        %v887 = vunpack.c.l.b16 %v847
        %v888 = vunpack.c.h.b16 %v847
        %v889 = vunpack.c.l.b16 %v848
        %v890 = vunpack.c.h.b16 %v848
        %v891 = vunpack.c.l.b16 %v849
        %v892 = vunpack.c.h.b16 %v849
        %v893 = vunpack.c.l.b16 %v850
        %v894 = vunpack.c.h.b16 %v850
        %v895 = vunpack.c.l.b16 %v851
        %v896 = vunpack.c.h.b16 %v851
        %v897 = vunpack.c.l.b16 %v852
        %v898 = vunpack.c.h.b16 %v852
        %v899 = vunpack.c.l.b16 %v853
        %v900 = vunpack.c.h.b16 %v853
        %v901 = vunpack.c.l.b16 %v854
        %v902 = vunpack.c.h.b16 %v854
        %v903 = vpack.c.b16 %v873, %v871
        %v904 = vpack.c.b16 %v874, %v872
        %v905 = vpack.c.b16 %v877, %v875
        %v906 = vpack.c.b16 %v878, %v876
        %v907 = vpack.c.b16 %v881, %v879
        %v908 = vpack.c.b16 %v882, %v880
        %v909 = vpack.c.b16 %v885, %v883
        %v910 = vpack.c.b16 %v886, %v884
        %v911 = vpack.c.b16 %v889, %v887
        %v912 = vpack.c.b16 %v890, %v888
        %v913 = vpack.c.b16 %v893, %v891
        %v914 = vpack.c.b16 %v894, %v892
        %v915 = vpack.c.b16 %v897, %v895
        %v916 = vpack.c.b16 %v898, %v896
        %v917 = vpack.c.b16 %v901, %v899
        %v918 = vpack.c.b16 %v902, %v900
        %935 = vmatprep.subr.bf16.mxu0 %v904
        %936 = vmatpush1.bf16.msra.mxu0 %v903
        %937 = vmatprep.subr.bf16.mxu0 %v906
        %938 = vmatpush1.bf16.msra.mxu0 %v905
        %939 = vmatprep.subr.bf16.mxu0 %v908
        %940 = vmatpush1.bf16.msra.mxu0 %v907
        %941 = vmatprep.subr.bf16.mxu0 %v910
        %942 = vmatpush1.bf16.msra.mxu0 %v909
        %943 = vmatprep.subr.bf16.mxu0 %v912
        %944 = vmatpush1.bf16.msra.mxu0 %v911
        %945 = vmatprep.subr.bf16.mxu0 %v914
        %946 = vmatpush1.bf16.msra.mxu0 %v913
        %947 = vmatprep.subr.bf16.mxu0 %v916
        %948 = vmatpush1.bf16.msra.mxu0 %v915
        %949 = vmatprep.subr.bf16.mxu0 %v918
        %950 = vmatpush1.bf16.msra.mxu0 %v917
        %951 = vmatprep.subr.bf16.mxu0 0
        %952 = vmatpush1.bf16.msra.mxu0 0
        %953 = vmatprep.subr.bf16.mxu0 0
        %954 = vmatpush1.bf16.msra.mxu0 0
        %955 = vmatprep.subr.bf16.mxu0 0
        %956 = vmatpush1.bf16.msra.mxu0 0
        %957 = vmatprep.subr.bf16.mxu0 0
        %958 = vmatpush1.bf16.msra.mxu0 0
        %959 = vmatprep.subr.bf16.mxu0 0
        %960 = vmatpush1.bf16.msra.mxu0 0
        %961 = vmatprep.subr.bf16.mxu0 0
        %962 = vmatpush1.bf16.msra.mxu0 0
        %963 = vmatprep.subr.bf16.mxu0 0
        %964 = vmatpush1.bf16.msra.mxu0 0
        %965 = vmatprep.subr.bf16.mxu0 0
        %966 = vmatpush1.bf16.msra.mxu0 0
        %967 = vmatprep.mubr.bf16.mxu0 0
        %968 = vmatmul.mubr.bf16.gmra.mrb[0].mxu0 %v836
        %v969 = vpop.f32.mrb[0].mxu0
        %v970 = vadd.f32 0.0, %v969
        %v971 = vpop.f32.mrb[0].mxu0
        %v972 = vadd.f32 0.0, %v971
        %v973 = vpop.f32.mrb[0].mxu0
        %v974 = vadd.f32 0.0, %v973
        %v975 = vpop.f32.mrb[0].mxu0
        %v976 = vadd.f32 0.0, %v975
        %977 = vmatprep.mubr.bf16.mxu0 0
        %978 = vmatmul.mubr.bf16.gmra.mrb[0].mxu0 %v837
        %v979 = vpop.f32.mrb[0].mxu0
        %v980 = vadd.f32 0.0, %v979
        %v981 = vpop.f32.mrb[0].mxu0
        %v982 = vadd.f32 0.0, %v981
        %v983 = vpop.f32.mrb[0].mxu0
        %v984 = vadd.f32 0.0, %v983
        %v985 = vpop.f32.mrb[0].mxu0
        %v986 = vadd.f32 0.0, %v985
        %987 = vdwg.mxu0
        %v988 = vadd.f32 %v804, %v970
        %v989 = vadd.f32 %v806, %v972
        %v990 = vadd.f32 %v808, %v974
        %v991 = vadd.f32 %v810, %v976
        %v992 = vadd.f32 %v814, %v980
        %v993 = vadd.f32 %v816, %v982
        %v994 = vadd.f32 %v818, %v984
        %v995 = vadd.f32 %v820, %v986
        %v996 = vmax.f32 %v988, 0.0
        %v997 = vmax.f32 %v989, 0.0
        %v998 = vmax.f32 %v990, 0.0
        %v999 = vmax.f32 %v991, 0.0
        %v1000 = vmax.f32 %v992, 0.0
        %v1001 = vmax.f32 %v993, 0.0
        %v1002 = vmax.f32 %v994, 0.0
        %v1003 = vmax.f32 %v995, 0.0
        %v1004 = vmul.f32 %v996, %v996
        %v1005 = vmul.f32 %v997, %v997
        %v1006 = vmul.f32 %v998, %v998
        %v1007 = vmul.f32 %v999, %v999
        %v1008 = vmul.f32 %v1000, %v1000
        %v1009 = vmul.f32 %v1001, %v1001
        %v1010 = vmul.f32 %v1002, %v1002
        %v1011 = vmul.f32 %v1003, %v1003
        %v1012 = vld [vmem:[%s4] sm:$0xff]
        %v1013 = vld [vmem:[%s4 + $0x8] sm:$0xff]
        %v1014 = vld [vmem:[%s4 + $0x10] sm:$0xff]
        %v1015 = vld [vmem:[%s4 + $0x18] sm:$0xff]
        %v1016 = vld [vmem:[%s4 + $0x20] sm:$0xff]
        %v1017 = vld [vmem:[%s4 + $0x28] sm:$0xff]
        %v1018 = vld [vmem:[%s4 + $0x30] sm:$0xff]
        %v1019 = vld [vmem:[%s4 + $0x38] sm:$0xff]
        %v1020 = vld [vmem:[%s4 + $0x40] sm:$0xff]
        %v1021 = vld [vmem:[%s4 + $0x48] sm:$0xff]
        %v1022 = vld [vmem:[%s4 + $0x50] sm:$0xff]
        %v1023 = vld [vmem:[%s4 + $0x58] sm:$0xff]
        %v1024 = vld [vmem:[%s4 + $0x60] sm:$0xff]
        %v1025 = vld [vmem:[%s4 + $0x68] sm:$0xff]
        %v1026 = vld [vmem:[%s4 + $0x70] sm:$0xff]
        %v1027 = vld [vmem:[%s4 + $0x78] sm:$0xff]
        %v1028 = vld [vmem:[%s4 + $0x80] sm:$0xff]
        %v1029 = vld [vmem:[%s4 + $0x88] sm:$0xff]
        %v1030 = vld [vmem:[%s4 + $0x90] sm:$0xff]
        %v1031 = vld [vmem:[%s4 + $0x98] sm:$0xff]
        %v1032 = vld [vmem:[%s4 + $0xa0] sm:$0xff]
        %v1033 = vld [vmem:[%s4 + $0xa8] sm:$0xff]
        %v1034 = vld [vmem:[%s4 + $0xb0] sm:$0xff]
        %v1035 = vld [vmem:[%s4 + $0xb8] sm:$0xff]
        %v1036 = vld [vmem:[%s4 + $0xc0] sm:$0xff]
        %v1037 = vld [vmem:[%s4 + $0xc8] sm:$0xff]
        %v1038 = vld [vmem:[%s4 + $0xd0] sm:$0xff]
        %v1039 = vld [vmem:[%s4 + $0xd8] sm:$0xff]
        %v1040 = vld [vmem:[%s4 + $0xe0] sm:$0xff]
        %v1041 = vld [vmem:[%s4 + $0xe8] sm:$0xff]
        %v1042 = vld [vmem:[%s4 + $0xf0] sm:$0xff]
        %v1043 = vld [vmem:[%s4 + $0xf8] sm:$0xff]
        %1044 = vmatprep.subr.mxu0 0.0
        %1045 = vmatpush1.msra.mxu0 %v1012
        %1046 = vmatprep.subr.mxu0 0.0
        %1047 = vmatpush1.msra.mxu0 %v1013
        %1048 = vmatprep.subr.mxu0 0.0
        %1049 = vmatpush1.msra.mxu0 %v1014
        %1050 = vmatprep.subr.mxu0 0.0
        %1051 = vmatpush1.msra.mxu0 %v1015
        %1052 = vmatprep.subr.mxu0 0.0
        %1053 = vmatpush1.msra.mxu0 %v1016
        %1054 = vmatprep.subr.mxu0 0.0
        %1055 = vmatpush1.msra.mxu0 %v1017
        %1056 = vmatprep.subr.mxu0 0.0
        %1057 = vmatpush1.msra.mxu0 %v1018
        %1058 = vmatprep.subr.mxu0 0.0
        %1059 = vmatpush1.msra.mxu0 %v1019
        %1060 = vmatprep.subr.mxu0 0.0
        %1061 = vmatpush1.msra.mxu0 %v1020
        %1062 = vmatprep.subr.mxu0 0.0
        %1063 = vmatpush1.msra.mxu0 %v1021
        %1064 = vmatprep.subr.mxu0 0.0
        %1065 = vmatpush1.msra.mxu0 %v1022
        %1066 = vmatprep.subr.mxu0 0.0
        %1067 = vmatpush1.msra.mxu0 %v1023
        %1068 = vmatprep.subr.mxu0 0.0
        %1069 = vmatpush1.msra.mxu0 %v1024
        %1070 = vmatprep.subr.mxu0 0.0
        %1071 = vmatpush1.msra.mxu0 %v1025
        %1072 = vmatprep.subr.mxu0 0.0
        %1073 = vmatpush1.msra.mxu0 %v1026
        %1074 = vmatprep.subr.mxu0 0.0
        %1075 = vmatpush1.msra.mxu0 %v1027
        %1076 = vmatprep.subr.mxu0 0.0
        %1077 = vmatpush1.msra.mxu0 %v1028
        %1078 = vmatprep.subr.mxu0 0.0
        %1079 = vmatpush1.msra.mxu0 %v1029
        %1080 = vmatprep.subr.mxu0 0.0
        %1081 = vmatpush1.msra.mxu0 %v1030
        %1082 = vmatprep.subr.mxu0 0.0
        %1083 = vmatpush1.msra.mxu0 %v1031
        %1084 = vmatprep.subr.mxu0 0.0
        %1085 = vmatpush1.msra.mxu0 %v1032
        %1086 = vmatprep.subr.mxu0 0.0
        %1087 = vmatpush1.msra.mxu0 %v1033
        %1088 = vmatprep.subr.mxu0 0.0
        %1089 = vmatpush1.msra.mxu0 %v1034
        %1090 = vmatprep.subr.mxu0 0.0
        %1091 = vmatpush1.msra.mxu0 %v1035
        %1092 = vmatprep.subr.mxu0 0.0
        %1093 = vmatpush1.msra.mxu0 %v1036
        %1094 = vmatprep.subr.mxu0 0.0
        %1095 = vmatpush1.msra.mxu0 %v1037
        %1096 = vmatprep.subr.mxu0 0.0
        %1097 = vmatpush1.msra.mxu0 %v1038
        %1098 = vmatprep.subr.mxu0 0.0
        %1099 = vmatpush1.msra.mxu0 %v1039
        %1100 = vmatprep.subr.mxu0 0.0
        %1101 = vmatpush1.msra.mxu0 %v1040
        %1102 = vmatprep.subr.mxu0 0.0
        %1103 = vmatpush1.msra.mxu0 %v1041
        %1104 = vmatprep.subr.mxu0 0.0
        %1105 = vmatpush1.msra.mxu0 %v1042
        %1106 = vmatprep.subr.mxu0 0.0
        %1107 = vmatpush1.msra.mxu0 %v1043
        %1108 = vmatprep.mubr.f32.mxu0 %v997
        %1109 = vmatmul.mubr.f32.gmra.mrb[0].mxu0 %v996
        %v1110 = vpop.f32.mrb[0].mxu0
        %v1111 = vadd.f32 0.0, %v1110
        %v1112 = vpop.f32.mrb[0].mxu0
        %1113 = vmatprep.mubr.f32.mxu0 %v999
        %1114 = vmatmul.mubr.f32.gmra.mrb[0].mxu0 %v998
        %v1115 = vpop.f32.mrb[0].mxu0
        %v1116 = vadd.f32 0.0, %v1115
        %v1117 = vpop.f32.mrb[0].mxu0
        %1118 = vmatprep.mubr.f32.mxu0 %v1001
        %1119 = vmatmul.mubr.f32.gmra.mrb[0].mxu0 %v1000
        %v1120 = vpop.f32.mrb[0].mxu0
        %v1121 = vadd.f32 0.0, %v1120
        %v1122 = vpop.f32.mrb[0].mxu0
        %1123 = vmatprep.mubr.f32.mxu0 %v1003
        %1124 = vmatmul.mubr.f32.gmra.mrb[0].mxu0 %v1002
        %v1125 = vpop.f32.mrb[0].mxu0
        %v1126 = vadd.f32 0.0, %v1125
        %v1127 = vpop.f32.mrb[0].mxu0
        %1128 = vmatprep.mubr.f32.mxu0 %v1005
        %1129 = vmatmul.mubr.f32.gmra.mrb[0].mxu0 %v1004
        %v1130 = vpop.f32.mrb[0].mxu0
        %v1131 = vadd.f32 0.0, %v1130
        %v1132 = vpop.f32.mrb[0].mxu0
        %1133 = vmatprep.mubr.f32.mxu0 %v1007
        %1134 = vmatmul.mubr.f32.gmra.mrb[0].mxu0 %v1006
        %v1135 = vpop.f32.mrb[0].mxu0
        %v1136 = vadd.f32 0.0, %v1135
        %v1137 = vpop.f32.mrb[0].mxu0
        %1138 = vmatprep.mubr.f32.mxu0 %v1009
        %1139 = vmatmul.mubr.f32.gmra.mrb[0].mxu0 %v1008
        %v1140 = vpop.f32.mrb[0].mxu0
        %v1141 = vadd.f32 0.0, %v1140
        %v1142 = vpop.f32.mrb[0].mxu0
        %1143 = vmatprep.mubr.f32.mxu0 %v1011
        %1144 = vmatmul.mubr.f32.gmra.mrb[0].mxu0 %v1010
        %v1145 = vpop.f32.mrb[0].mxu0
        %v1146 = vadd.f32 0.0, %v1145
        %v1147 = vpop.f32.mrb[0].mxu0
        %1148 = vdwg.mxu0
        %vm1149 = vcmask 64512
        %v1150 = vsel %vm1149, %v1111, 0.0
        %v1151 = vsel %vm1149, %v1116, 0.0
        %v1152 = vadd.f32 %v1150, %v1151
        %v1153 = vrot.slane %v1152, 4
        %v1154 = vadd.f32 %v1152, %v1153
        %v1155 = vrot.slane %v1154, 2
        %v1156 = vadd.f32 %v1154, %v1155
        %v1157 = vrot.slane %v1156, 1
        %v1158 = vadd.f32 %v1156, %v1157
        %v1159 = vsel %vm1149, %v1121, 0.0
        %v1160 = vsel %vm1149, %v1126, 0.0
        %v1161 = vadd.f32 %v1159, %v1160
        %v1162 = vrot.slane %v1161, 4
        %v1163 = vadd.f32 %v1161, %v1162
        %v1164 = vrot.slane %v1163, 2
        %v1165 = vadd.f32 %v1163, %v1164
        %v1166 = vrot.slane %v1165, 1
        %v1167 = vadd.f32 %v1165, %v1166
        %v1168 = vsel %vm1149, %v1131, 0.0
        %v1169 = vsel %vm1149, %v1136, 0.0
        %v1170 = vadd.f32 %v1168, %v1169
        %v1171 = vrot.slane %v1170, 4
        %v1172 = vadd.f32 %v1170, %v1171
        %v1173 = vrot.slane %v1172, 2
        %v1174 = vadd.f32 %v1172, %v1173
        %v1175 = vrot.slane %v1174, 1
        %v1176 = vadd.f32 %v1174, %v1175
        %v1177 = vsel %vm1149, %v1141, 0.0
        %v1178 = vsel %vm1149, %v1146, 0.0
        %v1179 = vadd.f32 %v1177, %v1178
        %v1180 = vrot.slane %v1179, 4
        %v1181 = vadd.f32 %v1179, %v1180
        %v1182 = vrot.slane %v1181, 2
        %v1183 = vadd.f32 %v1181, %v1182
        %v1184 = vrot.slane %v1183, 1
        %v1185 = vadd.f32 %v1183, %v1184
        %v1186 = vmul.f32 %v1158, 0.001953125
        %v1187 = vmul.f32 %v1167, 0.001953125
        %v1188 = vmul.f32 %v1176, 0.001953125
        %v1189 = vmul.f32 %v1185, 0.001953125
        %v1190 = vmul.f32 %v1186, %v1186
        %v1191 = vmul.f32 %v1187, %v1187
        %v1192 = vsub.f32 %v1188, %v1190
        %v1193 = vsub.f32 %v1189, %v1191
        %v1194 = vmax.f32 %v1192, 0.0
        %v1195 = vmax.f32 %v1193, 0.0
        %v1196 = vadd.f32 %v1194, 1e-05
        %v1197 = vadd.f32 %v1195, 1e-05
        %v1198 = vrsqrt.pop %v1196
        %v1199 = vrsqrt.pop %v1197
        %v1200 = vmul.f32 %v1186, %v1198
        %v1201 = vmul.f32 %v1187, %v1199
        %vm1204 = vcmask 1041409
        %v1205 = vsel %vm1204, %v1199, %v1198
        %vm1209 = vcmask 1043459
        %v1210 = vsel %vm1209, %v1201, %v1200
        %vm1212 = vcmask 1041408
        %v1213 = vsel %vm1212, %v1205, %v1210
        %v1214 = vld [vmem:[%s5] sm:$0xff]
        %v1215 = vld [vmem:[%s5 + $0x8] sm:$0xff]
        %v1217 = vsel %vm1149, %v1213, 0
        %1219 = vmatprep.subr.mxu0 %v1215
        %1220 = vmatpush1.msra.mxu0 %v1214
        %1221 = vmatprep.subr.mxu0 0.0
        %1222 = vmatpush1.msra.mxu0 0.0
        %1223 = vmatprep.subr.mxu0 0.0
        %1224 = vmatpush1.msra.mxu0 0.0
        %1225 = vmatprep.subr.mxu0 0.0
        %1226 = vmatpush1.msra.mxu0 0.0
        %1227 = vmatprep.subr.mxu0 0.0
        %1228 = vmatpush1.msra.mxu0 0.0
        %1229 = vmatprep.subr.mxu0 0.0
        %1230 = vmatpush1.msra.mxu0 0.0
        %1231 = vmatprep.subr.mxu0 0.0
        %1232 = vmatpush1.msra.mxu0 0.0
        %1233 = vmatprep.subr.mxu0 0.0
        %1234 = vmatpush1.msra.mxu0 0.0
        %1235 = vmatprep.subr.mxu0 0.0
        %1236 = vmatpush1.msra.mxu0 0.0
        %1237 = vmatprep.subr.mxu0 0.0
        %1238 = vmatpush1.msra.mxu0 0.0
        %1239 = vmatprep.subr.mxu0 0.0
        %1240 = vmatpush1.msra.mxu0 0.0
        %1241 = vmatprep.subr.mxu0 0.0
        %1242 = vmatpush1.msra.mxu0 0.0
        %1243 = vmatprep.subr.mxu0 0.0
        %1244 = vmatpush1.msra.mxu0 0.0
        %1245 = vmatprep.subr.mxu0 0.0
        %1246 = vmatpush1.msra.mxu0 0.0
        %1247 = vmatprep.subr.mxu0 0.0
        %1248 = vmatpush1.msra.mxu0 0.0
        %1249 = vmatprep.subr.mxu0 0.0
        %1250 = vmatpush1.msra.mxu0 0.0
        %1251 = vmatprep.subr.mxu0 0.0
        %1252 = vmatpush1.msra.mxu0 0.0
        %1253 = vmatprep.subr.mxu0 0.0
        %1254 = vmatpush1.msra.mxu0 0.0
        %1255 = vmatprep.subr.mxu0 0.0
        %1256 = vmatpush1.msra.mxu0 0.0
        %1257 = vmatprep.subr.mxu0 0.0
        %1258 = vmatpush1.msra.mxu0 0.0
        %1259 = vmatprep.subr.mxu0 0.0
        %1260 = vmatpush1.msra.mxu0 0.0
        %1261 = vmatprep.subr.mxu0 0.0
        %1262 = vmatpush1.msra.mxu0 0.0
        %1263 = vmatprep.subr.mxu0 0.0
        %1264 = vmatpush1.msra.mxu0 0.0
        %1265 = vmatprep.subr.mxu0 0.0
        %1266 = vmatpush1.msra.mxu0 0.0
        %1267 = vmatprep.subr.mxu0 0.0
        %1268 = vmatpush1.msra.mxu0 0.0
        %1269 = vmatprep.subr.mxu0 0.0
        %1270 = vmatpush1.msra.mxu0 0.0
        %1271 = vmatprep.subr.mxu0 0.0
        %1272 = vmatpush1.msra.mxu0 0.0
        %1273 = vmatprep.subr.mxu0 0.0
        %1274 = vmatpush1.msra.mxu0 0.0
        %1275 = vmatprep.subr.mxu0 0.0
        %1276 = vmatpush1.msra.mxu0 0.0
        %1277 = vmatprep.subr.mxu0 0.0
        %1278 = vmatpush1.msra.mxu0 0.0
        %1279 = vmatprep.subr.mxu0 0.0
        %1280 = vmatpush1.msra.mxu0 0.0
        %1281 = vmatprep.subr.mxu0 0.0
        %1282 = vmatpush1.msra.mxu0 0.0
        %1283 = vmatprep.mubr.f32.mxu0 0.0
        %1284 = vmatmul.mubr.f32.gmra.mrb[0].mxu0 %v1217
        %v1285 = vpop.f32.mrb[0].mxu0
        %v1286 = vadd.f32 0.0, %v1285
        %v1287 = vpop.f32.mrb[0].mxu0
        %v1288 = vadd.f32 0.0, %v1287
        %1289 = vdwg.mxu0
        %v1290 = vld [vmem:[%s6] sm:$0x3]
        %v1292 = vlaneseq
        %v1293 = vshrl.u32 %v1292, 7
        %v1294 = vsub.s32 0, %v1293
        %v1295 = vrot.slane %v1290, %v1294
        %v1296 = vlaneseq
        %v1297 = vshrl.u32 %v1296, 7
        %v1298 = vsub.s32 1, %v1297
        %v1299 = vrot.slane %v1290, %v1298
        %v1302 = vsub.f32 %v1295, %v1286
        %v1303 = vsub.f32 %v1299, %v1288
        %v1306 = vcombine.low %v1286, %v1288
        %v1308 = vunpack.c.l.s4 1966171168
        %v1309 = vunpack.c.0.s8 %v1308
        %v1310 = vlaneseq
        %v1311 = vshrl.u32 %v1310, 7
        %v1312 = vsub.s32 %v1309, %v1311
        %v1313 = vrot.slane %v1306, %v1312
        %v1314 = vcombine.high %v1313, %v1313
        %v1316 = vunpack.c.l.s4 1966171168
        %v1317 = vunpack.c.0.s8 %v1316
        %v1318 = vlaneseq
        %v1319 = vshrl.u32 %v1318, 7
        %v1320 = vsub.s32 %v1317, %v1319
        %v1321 = vrot.slane %v1313, %v1320
        %v1323 = vunpack.c.l.s4 1966171168
        %v1324 = vunpack.c.0.s8 %v1323
        %v1325 = vlaneseq
        %v1326 = vshrl.u32 %v1325, 7
        %v1327 = vsub.s32 %v1324, %v1326
        %v1328 = vrot.slane %v1314, %v1327
        %v1329 = vlaneseq
        %v1330 = vshrl.u32 %v1329, 7
        %v1331 = vsub.s32 0, %v1330
        %v1332 = vrot.slane %v1321, %v1331
        %v1333 = vlaneseq
        %v1334 = vshrl.u32 %v1333, 7
        %v1335 = vsub.s32 1, %v1334
        %v1336 = vrot.slane %v1321, %v1335
        %v1337 = vlaneseq
        %v1338 = vshrl.u32 %v1337, 7
        %v1339 = vsub.s32 0, %v1338
        %v1340 = vrot.slane %v1328, %v1339
        %v1341 = vlaneseq
        %v1342 = vshrl.u32 %v1341, 7
        %v1343 = vsub.s32 1, %v1342
        %v1344 = vrot.slane %v1328, %v1343
        %v1349 = vmul.f32 %v996, %v1332
        %v1350 = vmul.f32 %v997, %v1336
        %v1351 = vmul.f32 %v998, %v1332
        %v1352 = vmul.f32 %v999, %v1336
        %v1353 = vmul.f32 %v1000, %v1340
        %v1354 = vmul.f32 %v1001, %v1344
        %v1355 = vmul.f32 %v1002, %v1340
        %v1356 = vmul.f32 %v1003, %v1344
        %v1359 = vcombine.low %v1302, %v1303
        %v1361 = vunpack.c.l.s4 1966171168
        %v1362 = vunpack.c.0.s8 %v1361
        %v1363 = vlaneseq
        %v1364 = vshrl.u32 %v1363, 7
        %v1365 = vsub.s32 %v1362, %v1364
        %v1366 = vrot.slane %v1359, %v1365
        %v1367 = vcombine.high %v1366, %v1366
        %v1369 = vunpack.c.l.s4 1966171168
        %v1370 = vunpack.c.0.s8 %v1369
        %v1371 = vlaneseq
        %v1372 = vshrl.u32 %v1371, 7
        %v1373 = vsub.s32 %v1370, %v1372
        %v1374 = vrot.slane %v1366, %v1373
        %v1376 = vunpack.c.l.s4 1966171168
        %v1377 = vunpack.c.0.s8 %v1376
        %v1378 = vlaneseq
        %v1379 = vshrl.u32 %v1378, 7
        %v1380 = vsub.s32 %v1377, %v1379
        %v1381 = vrot.slane %v1367, %v1380
        %v1382 = vcombine.high %v1374, %v1374
        %v1383 = vcombine.high %v1381, %v1381
        %v1384 = vlaneseq
        %v1385 = vshrl.u32 %v1384, 7
        %v1386 = vsub.s32 0, %v1385
        %v1387 = vrot.slane %v1382, %v1386
        %v1388 = vlaneseq
        %v1389 = vshrl.u32 %v1388, 7
        %v1390 = vsub.s32 1, %v1389
        %v1391 = vrot.slane %v1382, %v1390
        %v1392 = vlaneseq
        %v1393 = vshrl.u32 %v1392, 7
        %v1394 = vsub.s32 0, %v1393
        %v1395 = vrot.slane %v1383, %v1394
        %v1396 = vlaneseq
        %v1397 = vshrl.u32 %v1396, 7
        %v1398 = vsub.s32 1, %v1397
        %v1399 = vrot.slane %v1383, %v1398
        %v1404 = vadd.f32 %v1349, %v1387
        %v1405 = vadd.f32 %v1350, %v1391
        %v1406 = vadd.f32 %v1351, %v1387
        %v1407 = vadd.f32 %v1352, %v1391
        %v1408 = vadd.f32 %v1353, %v1395
        %v1409 = vadd.f32 %v1354, %v1399
        %v1410 = vadd.f32 %v1355, %v1395
        %v1411 = vadd.f32 %v1356, %v1399
        %v1420 = vrot.slane %v1404, 7
        %v1421 = vsel %vm505, %v506, %v1420
        %v1422 = vrot.slane %v1405, 7
        %v1423 = vsel %vm505, %v506, %v1422
        %v1424 = vrot.slane %v1406, 7
        %v1425 = vsel %vm505, %v1420, %v1424
        %v1426 = vrot.slane %v1407, 7
        %v1427 = vsel %vm505, %v1422, %v1426
        %v1428 = vrot.slane %v1408, 7
        %v1429 = vsel %vm505, %v506, %v1428
        %v1430 = vrot.slane %v1409, 7
        %v1431 = vsel %vm505, %v506, %v1430
        %v1432 = vrot.slane %v1410, 7
        %v1433 = vsel %vm505, %v1428, %v1432
        %v1434 = vrot.slane %v1411, 7
        %v1435 = vsel %vm505, %v1430, %v1434
        %v1444 = vpack.c.bf16 %v1425, %v1421
        %v1445 = vpack.c.bf16 %v1427, %v1423
        %v1446 = vpack.c.bf16 %v1433, %v1429
        %v1447 = vpack.c.bf16 %v1435, %v1431
        %v1448 = vld [vmem:[#allocation7] sm:$0xf]
        %v1449 = vld [vmem:[#allocation7 + $0x4] sm:$0xf]
        %v1450 = vld [vmem:[#allocation7 + $0x8] sm:$0xf]
        %v1451 = vld [vmem:[#allocation7 + $0xc] sm:$0xf]
        %v1452 = vld [vmem:[#allocation7 + $0x10] sm:$0xf]
        %v1453 = vld [vmem:[#allocation7 + $0x14] sm:$0xf]
        %v1454 = vld [vmem:[#allocation7 + $0x18] sm:$0xf]
        %v1455 = vld [vmem:[#allocation7 + $0x1c] sm:$0xf]
        %v1456 = vld [vmem:[#allocation7 + $0x20] sm:$0xf]
        %v1457 = vld [vmem:[#allocation7 + $0x24] sm:$0xf]
        %v1458 = vld [vmem:[#allocation7 + $0x28] sm:$0xf]
        %v1459 = vld [vmem:[#allocation7 + $0x2c] sm:$0xf]
        %v1460 = vld [vmem:[#allocation7 + $0x30] sm:$0xf]
        %v1461 = vld [vmem:[#allocation7 + $0x34] sm:$0xf]
        %v1462 = vld [vmem:[#allocation7 + $0x38] sm:$0xf]
        %v1463 = vld [vmem:[#allocation7 + $0x3c] sm:$0xf]
        %v1464 = vld [vmem:[#allocation7 + $0x40] sm:$0xf]
        %v1465 = vld [vmem:[#allocation7 + $0x44] sm:$0xf]
        %v1466 = vld [vmem:[#allocation7 + $0x48] sm:$0xf]
        %v1467 = vld [vmem:[#allocation7 + $0x4c] sm:$0xf]
        %v1468 = vld [vmem:[#allocation7 + $0x50] sm:$0xf]
        %v1469 = vld [vmem:[#allocation7 + $0x54] sm:$0xf]
        %v1470 = vld [vmem:[#allocation7 + $0x58] sm:$0xf]
        %v1471 = vld [vmem:[#allocation7 + $0x5c] sm:$0xf]
        %v1472 = vld [vmem:[#allocation7 + $0x60] sm:$0xf]
        %v1473 = vld [vmem:[#allocation7 + $0x64] sm:$0xf]
        %v1474 = vld [vmem:[#allocation7 + $0x68] sm:$0xf]
        %v1475 = vld [vmem:[#allocation7 + $0x6c] sm:$0xf]
        %v1476 = vld [vmem:[#allocation7 + $0x70] sm:$0xf]
        %v1477 = vld [vmem:[#allocation7 + $0x74] sm:$0xf]
        %v1478 = vld [vmem:[#allocation7 + $0x78] sm:$0xf]
        %v1479 = vld [vmem:[#allocation7 + $0x7c] sm:$0xf]
        %v1480 = vpack.c.bf16 %v1406, %v1404
        %v1481 = vpack.c.bf16 %v1407, %v1405
        %v1482 = vpack.c.bf16 %v1410, %v1408
        %v1483 = vpack.c.bf16 %v1411, %v1409
        %s1484 = scalar_lea.vmem [#allocation7], 128
        %v1485 = vld [vmem:[%s1484] sm:$0xf]
        %v1486 = vld [vmem:[%s1484 + $0x4] sm:$0xf]
        %v1487 = vld [vmem:[%s1484 + $0x8] sm:$0xf]
        %v1488 = vld [vmem:[%s1484 + $0xc] sm:$0xf]
        %v1489 = vld [vmem:[%s1484 + $0x10] sm:$0xf]
        %v1490 = vld [vmem:[%s1484 + $0x14] sm:$0xf]
        %v1491 = vld [vmem:[%s1484 + $0x18] sm:$0xf]
        %v1492 = vld [vmem:[%s1484 + $0x1c] sm:$0xf]
        %v1493 = vld [vmem:[%s1484 + $0x20] sm:$0xf]
        %v1494 = vld [vmem:[%s1484 + $0x24] sm:$0xf]
        %v1495 = vld [vmem:[%s1484 + $0x28] sm:$0xf]
        %v1496 = vld [vmem:[%s1484 + $0x2c] sm:$0xf]
        %v1497 = vld [vmem:[%s1484 + $0x30] sm:$0xf]
        %v1498 = vld [vmem:[%s1484 + $0x34] sm:$0xf]
        %v1499 = vld [vmem:[%s1484 + $0x38] sm:$0xf]
        %v1500 = vld [vmem:[%s1484 + $0x3c] sm:$0xf]
        %v1501 = vld [vmem:[%s1484 + $0x40] sm:$0xf]
        %v1502 = vld [vmem:[%s1484 + $0x44] sm:$0xf]
        %v1503 = vld [vmem:[%s1484 + $0x48] sm:$0xf]
        %v1504 = vld [vmem:[%s1484 + $0x4c] sm:$0xf]
        %v1505 = vld [vmem:[%s1484 + $0x50] sm:$0xf]
        %v1506 = vld [vmem:[%s1484 + $0x54] sm:$0xf]
        %v1507 = vld [vmem:[%s1484 + $0x58] sm:$0xf]
        %v1508 = vld [vmem:[%s1484 + $0x5c] sm:$0xf]
        %v1509 = vld [vmem:[%s1484 + $0x60] sm:$0xf]
        %v1510 = vld [vmem:[%s1484 + $0x64] sm:$0xf]
        %v1511 = vld [vmem:[%s1484 + $0x68] sm:$0xf]
        %v1512 = vld [vmem:[%s1484 + $0x6c] sm:$0xf]
        %v1513 = vld [vmem:[%s1484 + $0x70] sm:$0xf]
        %v1514 = vld [vmem:[%s1484 + $0x74] sm:$0xf]
        %v1515 = vld [vmem:[%s1484 + $0x78] sm:$0xf]
        %v1516 = vld [vmem:[%s1484 + $0x7c] sm:$0xf]
        %v1549 = vunpack.c.l.b16 %v1485
        %v1550 = vunpack.c.l.b16 %v1486
        %v1551 = vunpack.c.l.b16 %v1487
        %v1552 = vunpack.c.l.b16 %v1488
        %v1553 = vunpack.c.l.b16 %v1489
        %v1554 = vunpack.c.l.b16 %v1490
        %v1555 = vunpack.c.l.b16 %v1491
        %v1556 = vunpack.c.l.b16 %v1492
        %v1557 = vunpack.c.l.b16 %v1493
        %v1558 = vunpack.c.l.b16 %v1494
        %v1559 = vunpack.c.l.b16 %v1495
        %v1560 = vunpack.c.l.b16 %v1496
        %v1561 = vunpack.c.l.b16 %v1497
        %v1562 = vunpack.c.l.b16 %v1498
        %v1563 = vunpack.c.l.b16 %v1499
        %v1564 = vunpack.c.l.b16 %v1500
        %v1565 = vunpack.c.l.b16 %v1501
        %v1566 = vunpack.c.l.b16 %v1502
        %v1567 = vunpack.c.l.b16 %v1503
        %v1568 = vunpack.c.l.b16 %v1504
        %v1569 = vunpack.c.l.b16 %v1505
        %v1570 = vunpack.c.l.b16 %v1506
        %v1571 = vunpack.c.l.b16 %v1507
        %v1572 = vunpack.c.l.b16 %v1508
        %v1573 = vunpack.c.l.b16 %v1509
        %v1574 = vunpack.c.l.b16 %v1510
        %v1575 = vunpack.c.l.b16 %v1511
        %v1576 = vunpack.c.l.b16 %v1512
        %v1577 = vunpack.c.l.b16 %v1513
        %v1578 = vunpack.c.l.b16 %v1514
        %v1579 = vunpack.c.l.b16 %v1515
        %v1580 = vunpack.c.l.b16 %v1516
        %v1581 = vpack.c.b16 %v1550, %v1549
        %v1582 = vpack.c.b16 %v1552, %v1551
        %v1583 = vpack.c.b16 %v1554, %v1553
        %v1584 = vpack.c.b16 %v1556, %v1555
        %v1585 = vpack.c.b16 %v1558, %v1557
        %v1586 = vpack.c.b16 %v1560, %v1559
        %v1587 = vpack.c.b16 %v1562, %v1561
        %v1588 = vpack.c.b16 %v1564, %v1563
        %v1589 = vpack.c.b16 %v1566, %v1565
        %v1590 = vpack.c.b16 %v1568, %v1567
        %v1591 = vpack.c.b16 %v1570, %v1569
        %v1592 = vpack.c.b16 %v1572, %v1571
        %v1593 = vpack.c.b16 %v1574, %v1573
        %v1594 = vpack.c.b16 %v1576, %v1575
        %v1595 = vpack.c.b16 %v1578, %v1577
        %v1596 = vpack.c.b16 %v1580, %v1579
        %1613 = vmatprep.subr.bf16.mxu0 0
        %1614 = vmatpush1.bf16.msra.mxu0 %v1581
        %1615 = vmatprep.subr.bf16.mxu0 0
        %1616 = vmatpush1.bf16.msra.mxu0 %v1582
        %1617 = vmatprep.subr.bf16.mxu0 0
        %1618 = vmatpush1.bf16.msra.mxu0 %v1583
        %1619 = vmatprep.subr.bf16.mxu0 0
        %1620 = vmatpush1.bf16.msra.mxu0 %v1584
        %1621 = vmatprep.subr.bf16.mxu0 0
        %1622 = vmatpush1.bf16.msra.mxu0 %v1585
        %1623 = vmatprep.subr.bf16.mxu0 0
        %1624 = vmatpush1.bf16.msra.mxu0 %v1586
        %1625 = vmatprep.subr.bf16.mxu0 0
        %1626 = vmatpush1.bf16.msra.mxu0 %v1587
        %1627 = vmatprep.subr.bf16.mxu0 0
        %1628 = vmatpush1.bf16.msra.mxu0 %v1588
        %1629 = vmatprep.subr.bf16.mxu0 0
        %1630 = vmatpush1.bf16.msra.mxu0 %v1589
        %1631 = vmatprep.subr.bf16.mxu0 0
        %1632 = vmatpush1.bf16.msra.mxu0 %v1590
        %1633 = vmatprep.subr.bf16.mxu0 0
        %1634 = vmatpush1.bf16.msra.mxu0 %v1591
        %1635 = vmatprep.subr.bf16.mxu0 0
        %1636 = vmatpush1.bf16.msra.mxu0 %v1592
        %1637 = vmatprep.subr.bf16.mxu0 0
        %1638 = vmatpush1.bf16.msra.mxu0 %v1593
        %1639 = vmatprep.subr.bf16.mxu0 0
        %1640 = vmatpush1.bf16.msra.mxu0 %v1594
        %1641 = vmatprep.subr.bf16.mxu0 0
        %1642 = vmatpush1.bf16.msra.mxu0 %v1595
        %1643 = vmatprep.subr.bf16.mxu0 0
        %1644 = vmatpush1.bf16.msra.mxu0 %v1596
        %1645 = vmatprep.mubr.bf16.mxu0 %v1481
        %1646 = vmatmul.mubr.bf16.gmra.mrb[0].mxu0 %v1480
        %v1647 = vpop.f32.mrb[0].mxu0
        %v1648 = vadd.f32 0.0, %v1647
        %v1649 = vpop.f32.mrb[0].mxu0
        %v1650 = vpop.f32.mrb[0].mxu0
        %v1651 = vadd.f32 0.0, %v1650
        %v1652 = vpop.f32.mrb[0].mxu0
        %1653 = vmatprep.mubr.bf16.mxu0 %v1483
        %1654 = vmatmul.mubr.bf16.gmra.mrb[0].mxu0 %v1482
        %v1655 = vpop.f32.mrb[0].mxu0
        %v1656 = vadd.f32 0.0, %v1655
        %v1657 = vpop.f32.mrb[0].mxu0
        %v1658 = vpop.f32.mrb[0].mxu0
        %v1659 = vadd.f32 0.0, %v1658
        %v1660 = vpop.f32.mrb[0].mxu0
        %1661 = vdwg.mxu0
        %v1694 = vunpack.c.l.b16 %v1448
        %v1695 = vunpack.c.l.b16 %v1449
        %v1696 = vunpack.c.l.b16 %v1450
        %v1697 = vunpack.c.l.b16 %v1451
        %v1698 = vunpack.c.l.b16 %v1452
        %v1699 = vunpack.c.l.b16 %v1453
        %v1700 = vunpack.c.l.b16 %v1454
        %v1701 = vunpack.c.l.b16 %v1455
        %v1702 = vunpack.c.l.b16 %v1456
        %v1703 = vunpack.c.l.b16 %v1457
        %v1704 = vunpack.c.l.b16 %v1458
        %v1705 = vunpack.c.l.b16 %v1459
        %v1706 = vunpack.c.l.b16 %v1460
        %v1707 = vunpack.c.l.b16 %v1461
        %v1708 = vunpack.c.l.b16 %v1462
        %v1709 = vunpack.c.l.b16 %v1463
        %v1710 = vunpack.c.l.b16 %v1464
        %v1711 = vunpack.c.l.b16 %v1465
        %v1712 = vunpack.c.l.b16 %v1466
        %v1713 = vunpack.c.l.b16 %v1467
        %v1714 = vunpack.c.l.b16 %v1468
        %v1715 = vunpack.c.l.b16 %v1469
        %v1716 = vunpack.c.l.b16 %v1470
        %v1717 = vunpack.c.l.b16 %v1471
        %v1718 = vunpack.c.l.b16 %v1472
        %v1719 = vunpack.c.l.b16 %v1473
        %v1720 = vunpack.c.l.b16 %v1474
        %v1721 = vunpack.c.l.b16 %v1475
        %v1722 = vunpack.c.l.b16 %v1476
        %v1723 = vunpack.c.l.b16 %v1477
        %v1724 = vunpack.c.l.b16 %v1478
        %v1725 = vunpack.c.l.b16 %v1479
        %v1726 = vpack.c.b16 %v1695, %v1694
        %v1727 = vpack.c.b16 %v1697, %v1696
        %v1728 = vpack.c.b16 %v1699, %v1698
        %v1729 = vpack.c.b16 %v1701, %v1700
        %v1730 = vpack.c.b16 %v1703, %v1702
        %v1731 = vpack.c.b16 %v1705, %v1704
        %v1732 = vpack.c.b16 %v1707, %v1706
        %v1733 = vpack.c.b16 %v1709, %v1708
        %v1734 = vpack.c.b16 %v1711, %v1710
        %v1735 = vpack.c.b16 %v1713, %v1712
        %v1736 = vpack.c.b16 %v1715, %v1714
        %v1737 = vpack.c.b16 %v1717, %v1716
        %v1738 = vpack.c.b16 %v1719, %v1718
        %v1739 = vpack.c.b16 %v1721, %v1720
        %v1740 = vpack.c.b16 %v1723, %v1722
        %v1741 = vpack.c.b16 %v1725, %v1724
        %1758 = vmatprep.subr.bf16.mxu0 0
        %1759 = vmatpush1.bf16.msra.mxu0 %v1726
        %1760 = vmatprep.subr.bf16.mxu0 0
        %1761 = vmatpush1.bf16.msra.mxu0 %v1727
        %1762 = vmatprep.subr.bf16.mxu0 0
        %1763 = vmatpush1.bf16.msra.mxu0 %v1728
        %1764 = vmatprep.subr.bf16.mxu0 0
        %1765 = vmatpush1.bf16.msra.mxu0 %v1729
        %1766 = vmatprep.subr.bf16.mxu0 0
        %1767 = vmatpush1.bf16.msra.mxu0 %v1730
        %1768 = vmatprep.subr.bf16.mxu0 0
        %1769 = vmatpush1.bf16.msra.mxu0 %v1731
        %1770 = vmatprep.subr.bf16.mxu0 0
        %1771 = vmatpush1.bf16.msra.mxu0 %v1732
        %1772 = vmatprep.subr.bf16.mxu0 0
        %1773 = vmatpush1.bf16.msra.mxu0 %v1733
        %1774 = vmatprep.subr.bf16.mxu0 0
        %1775 = vmatpush1.bf16.msra.mxu0 %v1734
        %1776 = vmatprep.subr.bf16.mxu0 0
        %1777 = vmatpush1.bf16.msra.mxu0 %v1735
        %1778 = vmatprep.subr.bf16.mxu0 0
        %1779 = vmatpush1.bf16.msra.mxu0 %v1736
        %1780 = vmatprep.subr.bf16.mxu0 0
        %1781 = vmatpush1.bf16.msra.mxu0 %v1737
        %1782 = vmatprep.subr.bf16.mxu0 0
        %1783 = vmatpush1.bf16.msra.mxu0 %v1738
        %1784 = vmatprep.subr.bf16.mxu0 0
        %1785 = vmatpush1.bf16.msra.mxu0 %v1739
        %1786 = vmatprep.subr.bf16.mxu0 0
        %1787 = vmatpush1.bf16.msra.mxu0 %v1740
        %1788 = vmatprep.subr.bf16.mxu0 0
        %1789 = vmatpush1.bf16.msra.mxu0 %v1741
        %1790 = vmatprep.mubr.bf16.mxu0 %v1445
        %1791 = vmatmul.mubr.bf16.gmra.mrb[0].mxu0 %v1444
        %v1792 = vpop.f32.mrb[0].mxu0
        %v1793 = vadd.f32 %v1648, %v1792
        %v1794 = vpop.f32.mrb[0].mxu0
        %v1795 = vpop.f32.mrb[0].mxu0
        %v1796 = vadd.f32 %v1651, %v1795
        %v1797 = vpop.f32.mrb[0].mxu0
        %1798 = vmatprep.mubr.bf16.mxu0 %v1447
        %1799 = vmatmul.mubr.bf16.gmra.mrb[0].mxu0 %v1446
        %v1800 = vpop.f32.mrb[0].mxu0
        %v1801 = vadd.f32 %v1656, %v1800
        %v1802 = vpop.f32.mrb[0].mxu0
        %v1803 = vpop.f32.mrb[0].mxu0
        %v1804 = vadd.f32 %v1659, %v1803
        %v1805 = vpop.f32.mrb[0].mxu0
        %1806 = vdwg.mxu0
        %v1807 = vrot.slane %v1404, 1
        %v1808 = vrot.slane %v1406, 1
        %v1809 = vsel %vm822, %v1807, %v1808
        %v1810 = vrot.slane %v1405, 1
        %v1811 = vrot.slane %v1407, 1
        %v1812 = vsel %vm822, %v1810, %v1811
        %v1813 = vsel %vm822, %v1808, %v826
        %v1814 = vsel %vm822, %v1811, %v826
        %v1815 = vrot.slane %v1408, 1
        %v1816 = vrot.slane %v1410, 1
        %v1817 = vsel %vm822, %v1815, %v1816
        %v1818 = vrot.slane %v1409, 1
        %v1819 = vrot.slane %v1411, 1
        %v1820 = vsel %vm822, %v1818, %v1819
        %v1821 = vsel %vm822, %v1816, %v826
        %v1822 = vsel %vm822, %v1819, %v826
        %v1831 = vpack.c.bf16 %v1813, %v1809
        %v1832 = vpack.c.bf16 %v1814, %v1812
        %v1833 = vpack.c.bf16 %v1821, %v1817
        %v1834 = vpack.c.bf16 %v1822, %v1820
        %s1835 = scalar_lea.vmem [#allocation7], 256
        %v1836 = vld [vmem:[%s1835] sm:$0xf]
        %v1837 = vld [vmem:[%s1835 + $0x4] sm:$0xf]
        %v1838 = vld [vmem:[%s1835 + $0x8] sm:$0xf]
        %v1839 = vld [vmem:[%s1835 + $0xc] sm:$0xf]
        %v1840 = vld [vmem:[%s1835 + $0x10] sm:$0xf]
        %v1841 = vld [vmem:[%s1835 + $0x14] sm:$0xf]
        %v1842 = vld [vmem:[%s1835 + $0x18] sm:$0xf]
        %v1843 = vld [vmem:[%s1835 + $0x1c] sm:$0xf]
        %v1844 = vld [vmem:[%s1835 + $0x20] sm:$0xf]
        %v1845 = vld [vmem:[%s1835 + $0x24] sm:$0xf]
        %v1846 = vld [vmem:[%s1835 + $0x28] sm:$0xf]
        %v1847 = vld [vmem:[%s1835 + $0x2c] sm:$0xf]
        %v1848 = vld [vmem:[%s1835 + $0x30] sm:$0xf]
        %v1849 = vld [vmem:[%s1835 + $0x34] sm:$0xf]
        %v1850 = vld [vmem:[%s1835 + $0x38] sm:$0xf]
        %v1851 = vld [vmem:[%s1835 + $0x3c] sm:$0xf]
        %v1852 = vld [vmem:[%s1835 + $0x40] sm:$0xf]
        %v1853 = vld [vmem:[%s1835 + $0x44] sm:$0xf]
        %v1854 = vld [vmem:[%s1835 + $0x48] sm:$0xf]
        %v1855 = vld [vmem:[%s1835 + $0x4c] sm:$0xf]
        %v1856 = vld [vmem:[%s1835 + $0x50] sm:$0xf]
        %v1857 = vld [vmem:[%s1835 + $0x54] sm:$0xf]
        %v1858 = vld [vmem:[%s1835 + $0x58] sm:$0xf]
        %v1859 = vld [vmem:[%s1835 + $0x5c] sm:$0xf]
        %v1860 = vld [vmem:[%s1835 + $0x60] sm:$0xf]
        %v1861 = vld [vmem:[%s1835 + $0x64] sm:$0xf]
        %v1862 = vld [vmem:[%s1835 + $0x68] sm:$0xf]
        %v1863 = vld [vmem:[%s1835 + $0x6c] sm:$0xf]
        %v1864 = vld [vmem:[%s1835 + $0x70] sm:$0xf]
        %v1865 = vld [vmem:[%s1835 + $0x74] sm:$0xf]
        %v1866 = vld [vmem:[%s1835 + $0x78] sm:$0xf]
        %v1867 = vld [vmem:[%s1835 + $0x7c] sm:$0xf]
        %v1900 = vunpack.c.l.b16 %v1836
        %v1901 = vunpack.c.l.b16 %v1837
        %v1902 = vunpack.c.l.b16 %v1838
        %v1903 = vunpack.c.l.b16 %v1839
        %v1904 = vunpack.c.l.b16 %v1840
        %v1905 = vunpack.c.l.b16 %v1841
        %v1906 = vunpack.c.l.b16 %v1842
        %v1907 = vunpack.c.l.b16 %v1843
        %v1908 = vunpack.c.l.b16 %v1844
        %v1909 = vunpack.c.l.b16 %v1845
        %v1910 = vunpack.c.l.b16 %v1846
        %v1911 = vunpack.c.l.b16 %v1847
        %v1912 = vunpack.c.l.b16 %v1848
        %v1913 = vunpack.c.l.b16 %v1849
        %v1914 = vunpack.c.l.b16 %v1850
        %v1915 = vunpack.c.l.b16 %v1851
        %v1916 = vunpack.c.l.b16 %v1852
        %v1917 = vunpack.c.l.b16 %v1853
        %v1918 = vunpack.c.l.b16 %v1854
        %v1919 = vunpack.c.l.b16 %v1855
        %v1920 = vunpack.c.l.b16 %v1856
        %v1921 = vunpack.c.l.b16 %v1857
        %v1922 = vunpack.c.l.b16 %v1858
        %v1923 = vunpack.c.l.b16 %v1859
        %v1924 = vunpack.c.l.b16 %v1860
        %v1925 = vunpack.c.l.b16 %v1861
        %v1926 = vunpack.c.l.b16 %v1862
        %v1927 = vunpack.c.l.b16 %v1863
        %v1928 = vunpack.c.l.b16 %v1864
        %v1929 = vunpack.c.l.b16 %v1865
        %v1930 = vunpack.c.l.b16 %v1866
        %v1931 = vunpack.c.l.b16 %v1867
        %v1932 = vpack.c.b16 %v1901, %v1900
        %v1933 = vpack.c.b16 %v1903, %v1902
        %v1934 = vpack.c.b16 %v1905, %v1904
        %v1935 = vpack.c.b16 %v1907, %v1906
        %v1936 = vpack.c.b16 %v1909, %v1908
        %v1937 = vpack.c.b16 %v1911, %v1910
        %v1938 = vpack.c.b16 %v1913, %v1912
        %v1939 = vpack.c.b16 %v1915, %v1914
        %v1940 = vpack.c.b16 %v1917, %v1916
        %v1941 = vpack.c.b16 %v1919, %v1918
        %v1942 = vpack.c.b16 %v1921, %v1920
        %v1943 = vpack.c.b16 %v1923, %v1922
        %v1944 = vpack.c.b16 %v1925, %v1924
        %v1945 = vpack.c.b16 %v1927, %v1926
        %v1946 = vpack.c.b16 %v1929, %v1928
        %v1947 = vpack.c.b16 %v1931, %v1930
        %1964 = vmatprep.subr.bf16.mxu0 0
        %1965 = vmatpush1.bf16.msra.mxu0 %v1932
        %1966 = vmatprep.subr.bf16.mxu0 0
        %1967 = vmatpush1.bf16.msra.mxu0 %v1933
        %1968 = vmatprep.subr.bf16.mxu0 0
        %1969 = vmatpush1.bf16.msra.mxu0 %v1934
        %1970 = vmatprep.subr.bf16.mxu0 0
        %1971 = vmatpush1.bf16.msra.mxu0 %v1935
        %1972 = vmatprep.subr.bf16.mxu0 0
        %1973 = vmatpush1.bf16.msra.mxu0 %v1936
        %1974 = vmatprep.subr.bf16.mxu0 0
        %1975 = vmatpush1.bf16.msra.mxu0 %v1937
        %1976 = vmatprep.subr.bf16.mxu0 0
        %1977 = vmatpush1.bf16.msra.mxu0 %v1938
        %1978 = vmatprep.subr.bf16.mxu0 0
        %1979 = vmatpush1.bf16.msra.mxu0 %v1939
        %1980 = vmatprep.subr.bf16.mxu0 0
        %1981 = vmatpush1.bf16.msra.mxu0 %v1940
        %1982 = vmatprep.subr.bf16.mxu0 0
        %1983 = vmatpush1.bf16.msra.mxu0 %v1941
        %1984 = vmatprep.subr.bf16.mxu0 0
        %1985 = vmatpush1.bf16.msra.mxu0 %v1942
        %1986 = vmatprep.subr.bf16.mxu0 0
        %1987 = vmatpush1.bf16.msra.mxu0 %v1943
        %1988 = vmatprep.subr.bf16.mxu0 0
        %1989 = vmatpush1.bf16.msra.mxu0 %v1944
        %1990 = vmatprep.subr.bf16.mxu0 0
        %1991 = vmatpush1.bf16.msra.mxu0 %v1945
        %1992 = vmatprep.subr.bf16.mxu0 0
        %1993 = vmatpush1.bf16.msra.mxu0 %v1946
        %1994 = vmatprep.subr.bf16.mxu0 0
        %1995 = vmatpush1.bf16.msra.mxu0 %v1947
        %1996 = vmatprep.mubr.bf16.mxu0 %v1832
        %1997 = vmatmul.mubr.bf16.gmra.mrb[0].mxu0 %v1831
        %v1998 = vpop.f32.mrb[0].mxu0
        %v1999 = vadd.f32 0.0, %v1998
        %v2000 = vpop.f32.mrb[0].mxu0
        %v2001 = vpop.f32.mrb[0].mxu0
        %v2002 = vadd.f32 0.0, %v2001
        %v2003 = vpop.f32.mrb[0].mxu0
        %2004 = vmatprep.mubr.bf16.mxu0 %v1834
        %2005 = vmatmul.mubr.bf16.gmra.mrb[0].mxu0 %v1833
        %v2006 = vpop.f32.mrb[0].mxu0
        %v2007 = vadd.f32 0.0, %v2006
        %v2008 = vpop.f32.mrb[0].mxu0
        %v2009 = vpop.f32.mrb[0].mxu0
        %v2010 = vadd.f32 0.0, %v2009
        %v2011 = vpop.f32.mrb[0].mxu0
        %2012 = vdwg.mxu0
        %v2013 = vadd.f32 %v1793, %v1999
        %v2014 = vadd.f32 %v1796, %v2002
        %v2015 = vadd.f32 %v1801, %v2007
        %v2016 = vadd.f32 %v1804, %v2010
        %v2017 = vadd.f32 %v496, %v2013
        %v2018 = vadd.f32 %v497, %v2014
        %v2019 = vadd.f32 %v498, %v2015
        %v2020 = vadd.f32 %v499, %v2016
        %v2021 = vmul.f32 %v2017, %v2017
        %v2022 = vmul.f32 %v2018, %v2018
        %v2023 = vmul.f32 %v2019, %v2019
        %v2024 = vmul.f32 %v2020, %v2020
        %v2025 = vld [vmem:[%s7] sm:$0xff]
        %v2026 = vld [vmem:[%s7 + $0x8] sm:$0xff]
        %v2027 = vld [vmem:[%s7 + $0x10] sm:$0xff]
        %v2028 = vld [vmem:[%s7 + $0x18] sm:$0xff]
        %v2029 = vld [vmem:[%s7 + $0x20] sm:$0xff]
        %v2030 = vld [vmem:[%s7 + $0x28] sm:$0xff]
        %v2031 = vld [vmem:[%s7 + $0x30] sm:$0xff]
        %v2032 = vld [vmem:[%s7 + $0x38] sm:$0xff]
        %v2033 = vld [vmem:[%s7 + $0x40] sm:$0xff]
        %v2034 = vld [vmem:[%s7 + $0x48] sm:$0xff]
        %v2035 = vld [vmem:[%s7 + $0x50] sm:$0xff]
        %v2036 = vld [vmem:[%s7 + $0x58] sm:$0xff]
        %v2037 = vld [vmem:[%s7 + $0x60] sm:$0xff]
        %v2038 = vld [vmem:[%s7 + $0x68] sm:$0xff]
        %v2039 = vld [vmem:[%s7 + $0x70] sm:$0xff]
        %v2040 = vld [vmem:[%s7 + $0x78] sm:$0xff]
        %2041 = vmatprep.subr.mxu0 0.0
        %2042 = vmatpush1.msra.mxu0 %v2025
        %2043 = vmatprep.subr.mxu0 0.0
        %2044 = vmatpush1.msra.mxu0 %v2026
        %2045 = vmatprep.subr.mxu0 0.0
        %2046 = vmatpush1.msra.mxu0 %v2027
        %2047 = vmatprep.subr.mxu0 0.0
        %2048 = vmatpush1.msra.mxu0 %v2028
        %2049 = vmatprep.subr.mxu0 0.0
        %2050 = vmatpush1.msra.mxu0 %v2029
        %2051 = vmatprep.subr.mxu0 0.0
        %2052 = vmatpush1.msra.mxu0 %v2030
        %2053 = vmatprep.subr.mxu0 0.0
        %2054 = vmatpush1.msra.mxu0 %v2031
        %2055 = vmatprep.subr.mxu0 0.0
        %2056 = vmatpush1.msra.mxu0 %v2032
        %2057 = vmatprep.subr.mxu0 0.0
        %2058 = vmatpush1.msra.mxu0 %v2033
        %2059 = vmatprep.subr.mxu0 0.0
        %2060 = vmatpush1.msra.mxu0 %v2034
        %2061 = vmatprep.subr.mxu0 0.0
        %2062 = vmatpush1.msra.mxu0 %v2035
        %2063 = vmatprep.subr.mxu0 0.0
        %2064 = vmatpush1.msra.mxu0 %v2036
        %2065 = vmatprep.subr.mxu0 0.0
        %2066 = vmatpush1.msra.mxu0 %v2037
        %2067 = vmatprep.subr.mxu0 0.0
        %2068 = vmatpush1.msra.mxu0 %v2038
        %2069 = vmatprep.subr.mxu0 0.0
        %2070 = vmatpush1.msra.mxu0 %v2039
        %2071 = vmatprep.subr.mxu0 0.0
        %2072 = vmatpush1.msra.mxu0 %v2040
        %2073 = vmatprep.subr.mxu0 0.0
        %2074 = vmatpush1.msra.mxu0 0.0
        %2075 = vmatprep.subr.mxu0 0.0
        %2076 = vmatpush1.msra.mxu0 0.0
        %2077 = vmatprep.subr.mxu0 0.0
        %2078 = vmatpush1.msra.mxu0 0.0
        %2079 = vmatprep.subr.mxu0 0.0
        %2080 = vmatpush1.msra.mxu0 0.0
        %2081 = vmatprep.subr.mxu0 0.0
        %2082 = vmatpush1.msra.mxu0 0.0
        %2083 = vmatprep.subr.mxu0 0.0
        %2084 = vmatpush1.msra.mxu0 0.0
        %2085 = vmatprep.subr.mxu0 0.0
        %2086 = vmatpush1.msra.mxu0 0.0
        %2087 = vmatprep.subr.mxu0 0.0
        %2088 = vmatpush1.msra.mxu0 0.0
        %2089 = vmatprep.subr.mxu0 0.0
        %2090 = vmatpush1.msra.mxu0 0.0
        %2091 = vmatprep.subr.mxu0 0.0
        %2092 = vmatpush1.msra.mxu0 0.0
        %2093 = vmatprep.subr.mxu0 0.0
        %2094 = vmatpush1.msra.mxu0 0.0
        %2095 = vmatprep.subr.mxu0 0.0
        %2096 = vmatpush1.msra.mxu0 0.0
        %2097 = vmatprep.subr.mxu0 0.0
        %2098 = vmatpush1.msra.mxu0 0.0
        %2099 = vmatprep.subr.mxu0 0.0
        %2100 = vmatpush1.msra.mxu0 0.0
        %2101 = vmatprep.subr.mxu0 0.0
        %2102 = vmatpush1.msra.mxu0 0.0
        %2103 = vmatprep.subr.mxu0 0.0
        %2104 = vmatpush1.msra.mxu0 0.0
        %2105 = vmatprep.mubr.f32.mxu0 0.0
        %2106 = vmatmul.mubr.f32.gmra.mrb[0].mxu0 %v2017
        %v2107 = vpop.f32.mrb[0].mxu0
        %v2108 = vadd.f32 0.0, %v2107
        %v2109 = vpop.f32.mrb[0].mxu0
        %2110 = vmatprep.mubr.f32.mxu0 0.0
        %2111 = vmatmul.mubr.f32.gmra.mrb[0].mxu0 %v2018
        %v2112 = vpop.f32.mrb[0].mxu0
        %v2113 = vadd.f32 0.0, %v2112
        %v2114 = vpop.f32.mrb[0].mxu0
        %2115 = vmatprep.mubr.f32.mxu0 0.0
        %2116 = vmatmul.mubr.f32.gmra.mrb[0].mxu0 %v2019
        %v2117 = vpop.f32.mrb[0].mxu0
        %v2118 = vadd.f32 0.0, %v2117
        %v2119 = vpop.f32.mrb[0].mxu0
        %2120 = vmatprep.mubr.f32.mxu0 0.0
        %2121 = vmatmul.mubr.f32.gmra.mrb[0].mxu0 %v2020
        %v2122 = vpop.f32.mrb[0].mxu0
        %v2123 = vadd.f32 0.0, %v2122
        %v2124 = vpop.f32.mrb[0].mxu0
        %2125 = vmatprep.mubr.f32.mxu0 0.0
        %2126 = vmatmul.mubr.f32.gmra.mrb[0].mxu0 %v2021
        %v2127 = vpop.f32.mrb[0].mxu0
        %v2128 = vadd.f32 0.0, %v2127
        %v2129 = vpop.f32.mrb[0].mxu0
        %2130 = vmatprep.mubr.f32.mxu0 0.0
        %2131 = vmatmul.mubr.f32.gmra.mrb[0].mxu0 %v2022
        %v2132 = vpop.f32.mrb[0].mxu0
        %v2133 = vadd.f32 0.0, %v2132
        %v2134 = vpop.f32.mrb[0].mxu0
        %2135 = vmatprep.mubr.f32.mxu0 0.0
        %2136 = vmatmul.mubr.f32.gmra.mrb[0].mxu0 %v2023
        %v2137 = vpop.f32.mrb[0].mxu0
        %v2138 = vadd.f32 0.0, %v2137
        %v2139 = vpop.f32.mrb[0].mxu0
        %2140 = vmatprep.mubr.f32.mxu0 0.0
        %2141 = vmatmul.mubr.f32.gmra.mrb[0].mxu0 %v2024
        %v2142 = vpop.f32.mrb[0].mxu0
        %v2143 = vadd.f32 0.0, %v2142
        %v2144 = vpop.f32.mrb[0].mxu0
        %2145 = vdwg.mxu0
        %v2146 = vsel %vm1149, %v2108, 0.0
        %v2147 = vsel %vm1149, %v2113, 0.0
        %v2148 = vadd.f32 %v2146, %v2147
        %v2149 = vrot.slane %v2148, 4
        %v2150 = vadd.f32 %v2148, %v2149
        %v2151 = vrot.slane %v2150, 2
        %v2152 = vadd.f32 %v2150, %v2151
        %v2153 = vrot.slane %v2152, 1
        %v2154 = vadd.f32 %v2152, %v2153
        %v2155 = vsel %vm1149, %v2118, 0.0
        %v2156 = vsel %vm1149, %v2123, 0.0
        %v2157 = vadd.f32 %v2155, %v2156
        %v2158 = vrot.slane %v2157, 4
        %v2159 = vadd.f32 %v2157, %v2158
        %v2160 = vrot.slane %v2159, 2
        %v2161 = vadd.f32 %v2159, %v2160
        %v2162 = vrot.slane %v2161, 1
        %v2163 = vadd.f32 %v2161, %v2162
        %v2164 = vsel %vm1149, %v2128, 0.0
        %v2165 = vsel %vm1149, %v2133, 0.0
        %v2166 = vadd.f32 %v2164, %v2165
        %v2167 = vrot.slane %v2166, 4
        %v2168 = vadd.f32 %v2166, %v2167
        %v2169 = vrot.slane %v2168, 2
        %v2170 = vadd.f32 %v2168, %v2169
        %v2171 = vrot.slane %v2170, 1
        %v2172 = vadd.f32 %v2170, %v2171
        %v2173 = vsel %vm1149, %v2138, 0.0
        %v2174 = vsel %vm1149, %v2143, 0.0
        %v2175 = vadd.f32 %v2173, %v2174
        %v2176 = vrot.slane %v2175, 4
        %v2177 = vadd.f32 %v2175, %v2176
        %v2178 = vrot.slane %v2177, 2
        %v2179 = vadd.f32 %v2177, %v2178
        %v2180 = vrot.slane %v2179, 1
        %v2181 = vadd.f32 %v2179, %v2180
        %v2182 = vmul.f32 %v2154, 0.00390625
        %v2183 = vmul.f32 %v2163, 0.00390625
        %v2184 = vmul.f32 %v2172, 0.00390625
        %v2185 = vmul.f32 %v2181, 0.00390625
        %v2186 = vmul.f32 %v2182, %v2182
        %v2187 = vmul.f32 %v2183, %v2183
        %v2188 = vsub.f32 %v2184, %v2186
        %v2189 = vsub.f32 %v2185, %v2187
        %v2190 = vmax.f32 %v2188, 0.0
        %v2191 = vmax.f32 %v2189, 0.0
        %v2192 = vadd.f32 %v2190, 1e-05
        %v2193 = vadd.f32 %v2191, 1e-05
        %v2194 = vrsqrt.pop %v2192
        %v2195 = vrsqrt.pop %v2193
        %v2196 = vmul.f32 %v2182, %v2194
        %v2197 = vmul.f32 %v2183, %v2195
        %v2200 = vsel %vm1204, %v2195, %v2194
        %v2204 = vsel %vm1209, %v2197, %v2196
        %v2206 = vsel %vm1212, %v2200, %v2204
        %v2207 = vld [vmem:[%s8] sm:$0xff]
        %v2209 = vsel %vm1149, %v2206, 0
        %2211 = vmatprep.subr.mxu0 0.0
        %2212 = vmatpush1.msra.mxu0 %v2207
        %2213 = vmatprep.subr.mxu0 0.0
        %2214 = vmatpush1.msra.mxu0 0.0
        %2215 = vmatprep.subr.mxu0 0.0
        %2216 = vmatpush1.msra.mxu0 0.0
        %2217 = vmatprep.subr.mxu0 0.0
        %2218 = vmatpush1.msra.mxu0 0.0
        %2219 = vmatprep.subr.mxu0 0.0
        %2220 = vmatpush1.msra.mxu0 0.0
        %2221 = vmatprep.subr.mxu0 0.0
        %2222 = vmatpush1.msra.mxu0 0.0
        %2223 = vmatprep.subr.mxu0 0.0
        %2224 = vmatpush1.msra.mxu0 0.0
        %2225 = vmatprep.subr.mxu0 0.0
        %2226 = vmatpush1.msra.mxu0 0.0
        %2227 = vmatprep.subr.mxu0 0.0
        %2228 = vmatpush1.msra.mxu0 0.0
        %2229 = vmatprep.subr.mxu0 0.0
        %2230 = vmatpush1.msra.mxu0 0.0
        %2231 = vmatprep.subr.mxu0 0.0
        %2232 = vmatpush1.msra.mxu0 0.0
        %2233 = vmatprep.subr.mxu0 0.0
        %2234 = vmatpush1.msra.mxu0 0.0
        %2235 = vmatprep.subr.mxu0 0.0
        %2236 = vmatpush1.msra.mxu0 0.0
        %2237 = vmatprep.subr.mxu0 0.0
        %2238 = vmatpush1.msra.mxu0 0.0
        %2239 = vmatprep.subr.mxu0 0.0
        %2240 = vmatpush1.msra.mxu0 0.0
        %2241 = vmatprep.subr.mxu0 0.0
        %2242 = vmatpush1.msra.mxu0 0.0
        %2243 = vmatprep.subr.mxu0 0.0
        %2244 = vmatpush1.msra.mxu0 0.0
        %2245 = vmatprep.subr.mxu0 0.0
        %2246 = vmatpush1.msra.mxu0 0.0
        %2247 = vmatprep.subr.mxu0 0.0
        %2248 = vmatpush1.msra.mxu0 0.0
        %2249 = vmatprep.subr.mxu0 0.0
        %2250 = vmatpush1.msra.mxu0 0.0
        %2251 = vmatprep.subr.mxu0 0.0
        %2252 = vmatpush1.msra.mxu0 0.0
        %2253 = vmatprep.subr.mxu0 0.0
        %2254 = vmatpush1.msra.mxu0 0.0
        %2255 = vmatprep.subr.mxu0 0.0
        %2256 = vmatpush1.msra.mxu0 0.0
        %2257 = vmatprep.subr.mxu0 0.0
        %2258 = vmatpush1.msra.mxu0 0.0
        %2259 = vmatprep.subr.mxu0 0.0
        %2260 = vmatpush1.msra.mxu0 0.0
        %2261 = vmatprep.subr.mxu0 0.0
        %2262 = vmatpush1.msra.mxu0 0.0
        %2263 = vmatprep.subr.mxu0 0.0
        %2264 = vmatpush1.msra.mxu0 0.0
        %2265 = vmatprep.subr.mxu0 0.0
        %2266 = vmatpush1.msra.mxu0 0.0
        %2267 = vmatprep.subr.mxu0 0.0
        %2268 = vmatpush1.msra.mxu0 0.0
        %2269 = vmatprep.subr.mxu0 0.0
        %2270 = vmatpush1.msra.mxu0 0.0
        %2271 = vmatprep.subr.mxu0 0.0
        %2272 = vmatpush1.msra.mxu0 0.0
        %2273 = vmatprep.subr.mxu0 0.0
        %2274 = vmatpush1.msra.mxu0 0.0
        %2275 = vmatprep.mubr.f32.mxu0 0.0
        %2276 = vmatmul.mubr.f32.gmra.mrb[0].mxu0 %v2209
        %v2277 = vpop.f32.mrb[0].mxu0
        %v2278 = vadd.f32 0.0, %v2277
        %v2279 = vpop.f32.mrb[0].mxu0
        %2280 = vdwg.mxu0
        %v2281 = vld [vmem:[%s9] sm:$0x1]
        %v2283 = vlaneseq
        %v2284 = vshrl.u32 %v2283, 7
        %v2285 = vsub.s32 0, %v2284
        %v2286 = vrot.slane %v2281, %v2285
        %v2288 = vsub.f32 %v2286, %v2278
        %v2291 = vunpack.c.l.s4 1966171168
        %v2292 = vunpack.c.0.s8 %v2291
        %v2293 = vlaneseq
        %v2294 = vshrl.u32 %v2293, 7
        %v2295 = vsub.s32 %v2292, %v2294
        %v2296 = vrot.slane %v2278, %v2295
        %v2297 = vcombine.high %v2296, %v2296
        %v2299 = vunpack.c.l.s4 1966171168
        %v2300 = vunpack.c.0.s8 %v2299
        %v2301 = vlaneseq
        %v2302 = vshrl.u32 %v2301, 7
        %v2303 = vsub.s32 %v2300, %v2302
        %v2304 = vrot.slane %v2296, %v2303
        %v2306 = vunpack.c.l.s4 1966171168
        %v2307 = vunpack.c.0.s8 %v2306
        %v2308 = vlaneseq
        %v2309 = vshrl.u32 %v2308, 7
        %v2310 = vsub.s32 %v2307, %v2309
        %v2311 = vrot.slane %v2297, %v2310
        %v2312 = vlaneseq
        %v2313 = vshrl.u32 %v2312, 7
        %v2314 = vsub.s32 0, %v2313
        %v2315 = vrot.slane %v2304, %v2314
        %v2316 = vlaneseq
        %v2317 = vshrl.u32 %v2316, 7
        %v2318 = vsub.s32 0, %v2317
        %v2319 = vrot.slane %v2311, %v2318
        %v2322 = vmul.f32 %v2017, %v2315
        %v2323 = vmul.f32 %v2018, %v2315
        %v2324 = vmul.f32 %v2019, %v2319
        %v2325 = vmul.f32 %v2020, %v2319
        %v2328 = vunpack.c.l.s4 1966171168
        %v2329 = vunpack.c.0.s8 %v2328
        %v2330 = vlaneseq
        %v2331 = vshrl.u32 %v2330, 7
        %v2332 = vsub.s32 %v2329, %v2331
        %v2333 = vrot.slane %v2288, %v2332
        %v2334 = vcombine.high %v2333, %v2333
        %v2336 = vunpack.c.l.s4 1966171168
        %v2337 = vunpack.c.0.s8 %v2336
        %v2338 = vlaneseq
        %v2339 = vshrl.u32 %v2338, 7
        %v2340 = vsub.s32 %v2337, %v2339
        %v2341 = vrot.slane %v2333, %v2340
        %v2343 = vunpack.c.l.s4 1966171168
        %v2344 = vunpack.c.0.s8 %v2343
        %v2345 = vlaneseq
        %v2346 = vshrl.u32 %v2345, 7
        %v2347 = vsub.s32 %v2344, %v2346
        %v2348 = vrot.slane %v2334, %v2347
        %v2349 = vcombine.high %v2341, %v2341
        %v2350 = vcombine.high %v2348, %v2348
        %v2351 = vlaneseq
        %v2352 = vshrl.u32 %v2351, 7
        %v2353 = vsub.s32 0, %v2352
        %v2354 = vrot.slane %v2349, %v2353
        %v2355 = vlaneseq
        %v2356 = vshrl.u32 %v2355, 7
        %v2357 = vsub.s32 0, %v2356
        %v2358 = vrot.slane %v2350, %v2357
        %v2361 = vadd.f32 %v2322, %v2354
        %v2362 = vadd.f32 %v2323, %v2354
        %v2363 = vadd.f32 %v2324, %v2358
        %v2364 = vadd.f32 %v2325, %v2358
        %v2365 = vadd.f32 %v492, %v2361
        %v2366 = vadd.f32 %v493, %v2362
        %v2367 = vadd.f32 %v494, %v2363
        %v2368 = vadd.f32 %v495, %v2364
        %v2369 = vmax.f32 %v2365, 0.0
        %v2370 = vmax.f32 %v2366, 0.0
        %v2371 = vmax.f32 %v2367, 0.0
        %v2372 = vmax.f32 %v2368, 0.0
        %v2373 = vmul.f32 %v2369, %v2369
        %v2374 = vmul.f32 %v2370, %v2370
        %v2375 = vmul.f32 %v2371, %v2371
        %v2376 = vmul.f32 %v2372, %v2372
        %2377 = vmatprep.subr.mxu0 0.0
        %2378 = vmatpush1.msra.mxu0 %v2025
        %2379 = vmatprep.subr.mxu0 0.0
        %2380 = vmatpush1.msra.mxu0 %v2026
        %2381 = vmatprep.subr.mxu0 0.0
        %2382 = vmatpush1.msra.mxu0 %v2027
        %2383 = vmatprep.subr.mxu0 0.0
        %2384 = vmatpush1.msra.mxu0 %v2028
        %2385 = vmatprep.subr.mxu0 0.0
        %2386 = vmatpush1.msra.mxu0 %v2029
        %2387 = vmatprep.subr.mxu0 0.0
        %2388 = vmatpush1.msra.mxu0 %v2030
        %2389 = vmatprep.subr.mxu0 0.0
        %2390 = vmatpush1.msra.mxu0 %v2031
        %2391 = vmatprep.subr.mxu0 0.0
        %2392 = vmatpush1.msra.mxu0 %v2032
        %2393 = vmatprep.subr.mxu0 0.0
        %2394 = vmatpush1.msra.mxu0 %v2033
        %2395 = vmatprep.subr.mxu0 0.0
        %2396 = vmatpush1.msra.mxu0 %v2034
        %2397 = vmatprep.subr.mxu0 0.0
        %2398 = vmatpush1.msra.mxu0 %v2035
        %2399 = vmatprep.subr.mxu0 0.0
        %2400 = vmatpush1.msra.mxu0 %v2036
        %2401 = vmatprep.subr.mxu0 0.0
        %2402 = vmatpush1.msra.mxu0 %v2037
        %2403 = vmatprep.subr.mxu0 0.0
        %2404 = vmatpush1.msra.mxu0 %v2038
        %2405 = vmatprep.subr.mxu0 0.0
        %2406 = vmatpush1.msra.mxu0 %v2039
        %2407 = vmatprep.subr.mxu0 0.0
        %2408 = vmatpush1.msra.mxu0 %v2040
        %2409 = vmatprep.subr.mxu0 0.0
        %2410 = vmatpush1.msra.mxu0 0.0
        %2411 = vmatprep.subr.mxu0 0.0
        %2412 = vmatpush1.msra.mxu0 0.0
        %2413 = vmatprep.subr.mxu0 0.0
        %2414 = vmatpush1.msra.mxu0 0.0
        %2415 = vmatprep.subr.mxu0 0.0
        %2416 = vmatpush1.msra.mxu0 0.0
        %2417 = vmatprep.subr.mxu0 0.0
        %2418 = vmatpush1.msra.mxu0 0.0
        %2419 = vmatprep.subr.mxu0 0.0
        %2420 = vmatpush1.msra.mxu0 0.0
        %2421 = vmatprep.subr.mxu0 0.0
        %2422 = vmatpush1.msra.mxu0 0.0
        %2423 = vmatprep.subr.mxu0 0.0
        %2424 = vmatpush1.msra.mxu0 0.0
        %2425 = vmatprep.subr.mxu0 0.0
        %2426 = vmatpush1.msra.mxu0 0.0
        %2427 = vmatprep.subr.mxu0 0.0
        %2428 = vmatpush1.msra.mxu0 0.0
        %2429 = vmatprep.subr.mxu0 0.0
        %2430 = vmatpush1.msra.mxu0 0.0
        %2431 = vmatprep.subr.mxu0 0.0
        %2432 = vmatpush1.msra.mxu0 0.0
        %2433 = vmatprep.subr.mxu0 0.0
        %2434 = vmatpush1.msra.mxu0 0.0
        %2435 = vmatprep.subr.mxu0 0.0
        %2436 = vmatpush1.msra.mxu0 0.0
        %2437 = vmatprep.subr.mxu0 0.0
        %2438 = vmatpush1.msra.mxu0 0.0
        %2439 = vmatprep.subr.mxu0 0.0
        %2440 = vmatpush1.msra.mxu0 0.0
        %2441 = vmatprep.mubr.f32.mxu0 0.0
        %2442 = vmatmul.mubr.f32.gmra.mrb[0].mxu0 %v2369
        %v2443 = vpop.f32.mrb[0].mxu0
        %v2444 = vadd.f32 0.0, %v2443
        %v2445 = vpop.f32.mrb[0].mxu0
        %2446 = vmatprep.mubr.f32.mxu0 0.0
        %2447 = vmatmul.mubr.f32.gmra.mrb[0].mxu0 %v2370
        %v2448 = vpop.f32.mrb[0].mxu0
        %v2449 = vadd.f32 0.0, %v2448
        %v2450 = vpop.f32.mrb[0].mxu0
        %2451 = vmatprep.mubr.f32.mxu0 0.0
        %2452 = vmatmul.mubr.f32.gmra.mrb[0].mxu0 %v2371
        %v2453 = vpop.f32.mrb[0].mxu0
        %v2454 = vadd.f32 0.0, %v2453
        %v2455 = vpop.f32.mrb[0].mxu0
        %2456 = vmatprep.mubr.f32.mxu0 0.0
        %2457 = vmatmul.mubr.f32.gmra.mrb[0].mxu0 %v2372
        %v2458 = vpop.f32.mrb[0].mxu0
        %v2459 = vadd.f32 0.0, %v2458
        %v2460 = vpop.f32.mrb[0].mxu0
        %2461 = vmatprep.mubr.f32.mxu0 0.0
        %2462 = vmatmul.mubr.f32.gmra.mrb[0].mxu0 %v2373
        %v2463 = vpop.f32.mrb[0].mxu0
        %v2464 = vadd.f32 0.0, %v2463
        %v2465 = vpop.f32.mrb[0].mxu0
        %2466 = vmatprep.mubr.f32.mxu0 0.0
        %2467 = vmatmul.mubr.f32.gmra.mrb[0].mxu0 %v2374
        %v2468 = vpop.f32.mrb[0].mxu0
        %v2469 = vadd.f32 0.0, %v2468
        %v2470 = vpop.f32.mrb[0].mxu0
        %2471 = vmatprep.mubr.f32.mxu0 0.0
        %2472 = vmatmul.mubr.f32.gmra.mrb[0].mxu0 %v2375
        %v2473 = vpop.f32.mrb[0].mxu0
        %v2474 = vadd.f32 0.0, %v2473
        %v2475 = vpop.f32.mrb[0].mxu0
        %2476 = vmatprep.mubr.f32.mxu0 0.0
        %2477 = vmatmul.mubr.f32.gmra.mrb[0].mxu0 %v2376
        %v2478 = vpop.f32.mrb[0].mxu0
        %v2479 = vadd.f32 0.0, %v2478
        %v2480 = vpop.f32.mrb[0].mxu0
        %2481 = vdwg.mxu0
        %v2482 = vsel %vm1149, %v2444, 0.0
        %v2483 = vsel %vm1149, %v2449, 0.0
        %v2484 = vadd.f32 %v2482, %v2483
        %v2485 = vrot.slane %v2484, 4
        %v2486 = vadd.f32 %v2484, %v2485
        %v2487 = vrot.slane %v2486, 2
        %v2488 = vadd.f32 %v2486, %v2487
        %v2489 = vrot.slane %v2488, 1
        %v2490 = vadd.f32 %v2488, %v2489
        %v2491 = vsel %vm1149, %v2454, 0.0
        %v2492 = vsel %vm1149, %v2459, 0.0
        %v2493 = vadd.f32 %v2491, %v2492
        %v2494 = vrot.slane %v2493, 4
        %v2495 = vadd.f32 %v2493, %v2494
        %v2496 = vrot.slane %v2495, 2
        %v2497 = vadd.f32 %v2495, %v2496
        %v2498 = vrot.slane %v2497, 1
        %v2499 = vadd.f32 %v2497, %v2498
        %v2500 = vsel %vm1149, %v2464, 0.0
        %v2501 = vsel %vm1149, %v2469, 0.0
        %v2502 = vadd.f32 %v2500, %v2501
        %v2503 = vrot.slane %v2502, 4
        %v2504 = vadd.f32 %v2502, %v2503
        %v2505 = vrot.slane %v2504, 2
        %v2506 = vadd.f32 %v2504, %v2505
        %v2507 = vrot.slane %v2506, 1
        %v2508 = vadd.f32 %v2506, %v2507
        %v2509 = vsel %vm1149, %v2474, 0.0
        %v2510 = vsel %vm1149, %v2479, 0.0
        %v2511 = vadd.f32 %v2509, %v2510
        %v2512 = vrot.slane %v2511, 4
        %v2513 = vadd.f32 %v2511, %v2512
        %v2514 = vrot.slane %v2513, 2
        %v2515 = vadd.f32 %v2513, %v2514
        %v2516 = vrot.slane %v2515, 1
        %v2517 = vadd.f32 %v2515, %v2516
        %v2518 = vmul.f32 %v2490, 0.00390625
        %v2519 = vmul.f32 %v2499, 0.00390625
        %v2520 = vmul.f32 %v2508, 0.00390625
        %v2521 = vmul.f32 %v2517, 0.00390625
        %v2522 = vmul.f32 %v2518, %v2518
        %v2523 = vmul.f32 %v2519, %v2519
        %v2524 = vsub.f32 %v2520, %v2522
        %v2525 = vsub.f32 %v2521, %v2523
        %v2526 = vmax.f32 %v2524, 0.0
        %v2527 = vmax.f32 %v2525, 0.0
        %v2528 = vadd.f32 %v2526, 1e-05
        %v2529 = vadd.f32 %v2527, 1e-05
        %v2530 = vrsqrt.pop %v2528
        %v2531 = vrsqrt.pop %v2529
        %v2532 = vmul.f32 %v2518, %v2530
        %v2533 = vmul.f32 %v2519, %v2531
        %v2536 = vsel %vm1204, %v2531, %v2530
        %v2540 = vsel %vm1209, %v2533, %v2532
        %v2542 = vsel %vm1212, %v2536, %v2540
        %v2543 = vld [vmem:[%s10] sm:$0xff]
        %v2545 = vsel %vm1149, %v2542, 0
        %2547 = vmatprep.subr.mxu0 0.0
        %2548 = vmatpush1.msra.mxu0 %v2543
        %2549 = vmatprep.subr.mxu0 0.0
        %2550 = vmatpush1.msra.mxu0 0.0
        %2551 = vmatprep.subr.mxu0 0.0
        %2552 = vmatpush1.msra.mxu0 0.0
        %2553 = vmatprep.subr.mxu0 0.0
        %2554 = vmatpush1.msra.mxu0 0.0
        %2555 = vmatprep.subr.mxu0 0.0
        %2556 = vmatpush1.msra.mxu0 0.0
        %2557 = vmatprep.subr.mxu0 0.0
        %2558 = vmatpush1.msra.mxu0 0.0
        %2559 = vmatprep.subr.mxu0 0.0
        %2560 = vmatpush1.msra.mxu0 0.0
        %2561 = vmatprep.subr.mxu0 0.0
        %2562 = vmatpush1.msra.mxu0 0.0
        %2563 = vmatprep.subr.mxu0 0.0
        %2564 = vmatpush1.msra.mxu0 0.0
        %2565 = vmatprep.subr.mxu0 0.0
        %2566 = vmatpush1.msra.mxu0 0.0
        %2567 = vmatprep.subr.mxu0 0.0
        %2568 = vmatpush1.msra.mxu0 0.0
        %2569 = vmatprep.subr.mxu0 0.0
        %2570 = vmatpush1.msra.mxu0 0.0
        %2571 = vmatprep.subr.mxu0 0.0
        %2572 = vmatpush1.msra.mxu0 0.0
        %2573 = vmatprep.subr.mxu0 0.0
        %2574 = vmatpush1.msra.mxu0 0.0
        %2575 = vmatprep.subr.mxu0 0.0
        %2576 = vmatpush1.msra.mxu0 0.0
        %2577 = vmatprep.subr.mxu0 0.0
        %2578 = vmatpush1.msra.mxu0 0.0
        %2579 = vmatprep.subr.mxu0 0.0
        %2580 = vmatpush1.msra.mxu0 0.0
        %2581 = vmatprep.subr.mxu0 0.0
        %2582 = vmatpush1.msra.mxu0 0.0
        %2583 = vmatprep.subr.mxu0 0.0
        %2584 = vmatpush1.msra.mxu0 0.0
        %2585 = vmatprep.subr.mxu0 0.0
        %2586 = vmatpush1.msra.mxu0 0.0
        %2587 = vmatprep.subr.mxu0 0.0
        %2588 = vmatpush1.msra.mxu0 0.0
        %2589 = vmatprep.subr.mxu0 0.0
        %2590 = vmatpush1.msra.mxu0 0.0
        %2591 = vmatprep.subr.mxu0 0.0
        %2592 = vmatpush1.msra.mxu0 0.0
        %2593 = vmatprep.subr.mxu0 0.0
        %2594 = vmatpush1.msra.mxu0 0.0
        %2595 = vmatprep.subr.mxu0 0.0
        %2596 = vmatpush1.msra.mxu0 0.0
        %2597 = vmatprep.subr.mxu0 0.0
        %2598 = vmatpush1.msra.mxu0 0.0
        %2599 = vmatprep.subr.mxu0 0.0
        %2600 = vmatpush1.msra.mxu0 0.0
        %2601 = vmatprep.subr.mxu0 0.0
        %2602 = vmatpush1.msra.mxu0 0.0
        %2603 = vmatprep.subr.mxu0 0.0
        %2604 = vmatpush1.msra.mxu0 0.0
        %2605 = vmatprep.subr.mxu0 0.0
        %2606 = vmatpush1.msra.mxu0 0.0
        %2607 = vmatprep.subr.mxu0 0.0
        %2608 = vmatpush1.msra.mxu0 0.0
        %2609 = vmatprep.subr.mxu0 0.0
        %2610 = vmatpush1.msra.mxu0 0.0
        %2611 = vmatprep.mubr.f32.mxu0 0.0
        %2612 = vmatmul.mubr.f32.gmra.mrb[0].mxu0 %v2545
        %v2613 = vpop.f32.mrb[0].mxu0
        %v2614 = vadd.f32 0.0, %v2613
        %v2615 = vpop.f32.mrb[0].mxu0
        %2616 = vdwg.mxu0
        %v2617 = vld [vmem:[%s11] sm:$0x1]
        %v2619 = vlaneseq
        %v2620 = vshrl.u32 %v2619, 7
        %v2621 = vsub.s32 0, %v2620
        %v2622 = vrot.slane %v2617, %v2621
        %v2624 = vsub.f32 %v2622, %v2614
        %v2627 = vunpack.c.l.s4 1966171168
        %v2628 = vunpack.c.0.s8 %v2627
        %v2629 = vlaneseq
        %v2630 = vshrl.u32 %v2629, 7
        %v2631 = vsub.s32 %v2628, %v2630
        %v2632 = vrot.slane %v2614, %v2631
        %v2633 = vcombine.high %v2632, %v2632
        %v2635 = vunpack.c.l.s4 1966171168
        %v2636 = vunpack.c.0.s8 %v2635
        %v2637 = vlaneseq
        %v2638 = vshrl.u32 %v2637, 7
        %v2639 = vsub.s32 %v2636, %v2638
        %v2640 = vrot.slane %v2632, %v2639
        %v2642 = vunpack.c.l.s4 1966171168
        %v2643 = vunpack.c.0.s8 %v2642
        %v2644 = vlaneseq
        %v2645 = vshrl.u32 %v2644, 7
        %v2646 = vsub.s32 %v2643, %v2645
        %v2647 = vrot.slane %v2633, %v2646
        %v2648 = vlaneseq
        %v2649 = vshrl.u32 %v2648, 7
        %v2650 = vsub.s32 0, %v2649
        %v2651 = vrot.slane %v2640, %v2650
        %v2652 = vlaneseq
        %v2653 = vshrl.u32 %v2652, 7
        %v2654 = vsub.s32 0, %v2653
        %v2655 = vrot.slane %v2647, %v2654
        %v2658 = vmul.f32 %v2369, %v2651
        %v2659 = vmul.f32 %v2370, %v2651
        %v2660 = vmul.f32 %v2371, %v2655
        %v2661 = vmul.f32 %v2372, %v2655
        %v2664 = vunpack.c.l.s4 1966171168
        %v2665 = vunpack.c.0.s8 %v2664
        %v2666 = vlaneseq
        %v2667 = vshrl.u32 %v2666, 7
        %v2668 = vsub.s32 %v2665, %v2667
        %v2669 = vrot.slane %v2624, %v2668
        %v2670 = vcombine.high %v2669, %v2669
        %v2672 = vunpack.c.l.s4 1966171168
        %v2673 = vunpack.c.0.s8 %v2672
        %v2674 = vlaneseq
        %v2675 = vshrl.u32 %v2674, 7
        %v2676 = vsub.s32 %v2673, %v2675
        %v2677 = vrot.slane %v2669, %v2676
        %v2679 = vunpack.c.l.s4 1966171168
        %v2680 = vunpack.c.0.s8 %v2679
        %v2681 = vlaneseq
        %v2682 = vshrl.u32 %v2681, 7
        %v2683 = vsub.s32 %v2680, %v2682
        %v2684 = vrot.slane %v2670, %v2683
        %v2685 = vcombine.high %v2677, %v2677
        %v2686 = vcombine.high %v2684, %v2684
        %v2687 = vlaneseq
        %v2688 = vshrl.u32 %v2687, 7
        %v2689 = vsub.s32 0, %v2688
        %v2690 = vrot.slane %v2685, %v2689
        %v2691 = vlaneseq
        %v2692 = vshrl.u32 %v2691, 7
        %v2693 = vsub.s32 0, %v2692
        %v2694 = vrot.slane %v2686, %v2693
        %v2697 = vadd.f32 %v2658, %v2690
        %v2698 = vadd.f32 %v2659, %v2690
        %v2699 = vadd.f32 %v2660, %v2694
        %v2700 = vadd.f32 %v2661, %v2694
        %2701 = vst [vmem:[%s487] sm:$0xff] %v2697
        %2702 = vst [vmem:[%s487 + $0x8] sm:$0xff] %v2698
        %2703 = vst [vmem:[%s487 + $0x10] sm:$0xff] %v2699
        %2704 = vst [vmem:[%s487 + $0x18] sm:$0xff] %v2700
        %s2705 = sand.u32 %s302, 1
        %s2706 = scalar_lea.sflag [#allocation4], %s2705
        %s2707 = sand.u32 %s302, 1
        %s2708 = smul.addr %s2707, 32
        %s2709 = scalar_lea.vmem [#allocation8], %s2708
        // Predicated region
        $region81: #{tpu_custom_call.1} parent=67 // pred_check
          %p2710 = pneg %p312
        $region82: #{tpu_custom_call.1} parent=67 // pred_check_branch
          %2712 = sbr.rel (%p2710) target = $region84
        $region83: #{tpu_custom_call.1} parent=67 // pred_region
          %s2713 = smul.u32 2, %s32
          %s2715 = ssub.s32 512, 512
          %2716 = vsyncadd %s2706, %s2715
          %s2717 = smul.addr %s2713, 2
          %s2718 = smul.addr %s2717, 128
          %s2719 = scalar_lea.hbm %s12, %s2718
          %s2720 = sshll.u32 %s2709, 4
          %s2721 = int_to_ptr.vmem [resolvable:$true] %s2720
          %2726 = dma.vmem_to_hbm [thread:$0]  %s2721, 512, %s2719, %s2706, 128, 128, 8
        $region84: #{tpu_custom_call.1} parent=67 // pred_fallthru
          _
      $region68: #{tpu_custom_call.1} parent=5 // pred_fallthru
        _
      %p2727 = scmp.le.s32.totalorder 2, %s27
      // Predicated region
      $region85: #{tpu_custom_call.1} parent=5 // pred_check
        %p2728 = pneg %p2727
      $region86: #{tpu_custom_call.1} parent=5 // pred_check_branch
        %2730 = sbr.rel (%p2728) target = $region88
      $region87: #{tpu_custom_call.1} parent=5 // pred_region
        %s2731 = ssub.s32 %s27, 2
        // Predicated region
        $region89: #{tpu_custom_call.1} parent=87 // pred_check
          %p2732 = pneg %p318
        $region90: #{tpu_custom_call.1} parent=87 // pred_check_branch
          %2734 = sbr.rel (%p2732) target = $region92
        $region91: #{tpu_custom_call.1} parent=87 // pred_region
          %s2735 = sand.u32 %s303, 1
          %s2736 = scalar_lea.sflag [#allocation4], %s2735
          %s2737 = sand.u32 %s303, 1
          %s2738 = smul.addr %s2737, 32
          %s2739 = scalar_lea.vmem [#allocation8], %s2738
          %2740 = dma.done %s2736, 512
        $region92: #{tpu_custom_call.1} parent=87 // pred_fallthru
          _
      $region88: #{tpu_custom_call.1} parent=5 // pred_fallthru
        _
    $region6: #{tpu_custom_call.1} parent=1 // loop_footer
      %s31 = sadd.s32 1, %s27
    $region7: #{tpu_custom_call.1} parent=1 // loop_footer_branch
      %26 = sbr.rel target = $region3
    $region8: #{tpu_custom_call.1} parent=1 // loop_exit
      _
    %2741 = vsyncpa [#allocation3], 1
    %s2742 = scalar_lea.sflag [#allocation3], 1
    %2743 = vsyncpa %s2742, 1
    %2744 = vsyncpa [#allocation6], 1
    %s2745 = scalar_lea.sflag [#allocation6], 1
    %2746 = vsyncpa %s2745, 1
    %2747 = vsyncpa [#allocation4], 1
    %s2748 = scalar_lea.sflag [#allocation4], 1
    %2749 = vsyncpa %s2748, 1

</llo_original>
